<compile_context>
chip_gen: v7x
topology: tpu7x:2x2x1
jax: 0.10.0
libtpu: 0.0.40
codegen_flags: <defaults>
</compile_context>

<pallas_src>
import functools

import jax
import jax.numpy as jnp
from jax.experimental import pallas as pl
from jax.experimental.pallas import tpu as pltpu


def _make_kernel(k, s, TH, Wo, TN, C1):
    TM = TH * Wo

    def kernel(x_ref, w_ref, b_ref, o_ref):
        # x_ref: (Hp_need, Wp_need, C1) bf16 -- whole padded image, resident across (j, r)
        # w_ref: (k*k*C1, TN)           bf16 -- BN scale folded in
        # b_ref: (1, TN)                f32  -- folded BN bias
        # o_ref: (TH, Wo, TN)           bf16
        r = pl.program_id(2)            # row-tile index (innermost grid axis)
        row0 = r * (TH * s)

        # Build the (TM, k*k*C1) im2col patch from k*k static tap slices.
        taps = []
        for kh in range(k):
            for kw in range(k):
                if s == 1:
                    xs = x_ref[pl.ds(row0 + kh, TH), pl.ds(kw, Wo), :]
                else:
                    # TODO(synk): s>1 path -- replace with wrapper-side phase
                    # split (pixel-unshuffle) to avoid strided slicing.
                    xs = x_ref[pl.ds(row0 + kh, (TH - 1) * s + 1),
                               pl.ds(kw, (Wo - 1) * s + 1), :][::s, ::s, :]
                taps.append(xs.reshape(TM, C1))     # free: Wo % 8 == 0
        patch = jnp.concatenate(taps, axis=-1)      # (TM, k*k*C1) bf16

        # Single wide-contraction MXU matmul, f32 accumulation.
        acc = jnp.dot(patch, w_ref[...], preferred_element_type=jnp.float32)

        # Epilogue: folded-BN bias + Hardswish (y * relu6(y + 3) / 6).
        y = acc + b_ref[...]
        y = y * jnp.clip(y + 3.0, 0.0, 6.0) * (1.0 / 6.0)
        o_ref[...] = y.reshape(TH, Wo, TN).astype(o_ref.dtype)

    return kernel


@functools.partial(jax.jit, static_argnames=("k", "s", "p"))
def conv_bn_hardswish(x_nchw, weight, gamma, beta, running_mean, running_var,
                      *, k, s, p, eps=1e-5):
    N, C1, H, W = x_nchw.shape
    C2 = weight.shape[0]
    assert weight.shape[1] == C1, "grouped conv (g>1) not supported"
    Ho = (H + 2 * p - k) // s + 1
    Wo = (W + 2 * p - k) // s + 1

    # ---- tile plan ---------------------------------------------------------
    TN = 128                                  # lane-dense output tile
    C2p = -(-C2 // TN) * TN
    nct = C2p // TN
    Wo_pad = -(-Wo // 8) * 8                  # keep TM sublane-aligned always
    TM_target = 256                           # ~32 f32 vregs of accumulator
    TH = max(1, min(Ho, TM_target // max(Wo_pad, 1)))
    nrt = -(-Ho // TH)
    # v7x megacore: make sure the parallel grid extent can feed 2 TensorCores.
    if N * nct * nrt < 2 and Ho > 1:
        TH = -(-Ho // 2)
        nrt = -(-Ho // TH)
    Ho_pad = nrt * TH
    Hp_need = (Ho_pad - 1) * s + k
    Wp_need = (Wo_pad - 1) * s + k

    # ---- activations: NCHW -> NHWC + zero pad, all in bf16 -----------------
    x = jnp.transpose(x_nchw.astype(jnp.bfloat16), (0, 2, 3, 1))    # (N,H,W,C1)
    xp = jnp.pad(x, ((0, 0),
                     (p, max(0, Hp_need - H - p)),
                     (p, max(0, Wp_need - W - p)),
                     (0, 0)))
    xp = xp[:, :Hp_need, :Wp_need, :]                               # (N,Hp,Wp,C1)

    # ---- weights: fold BN scale, reshape to (k*k*C1, C2p), bf16 ------------
    scale = gamma.astype(jnp.float32) * jax.lax.rsqrt(
        running_var.astype(jnp.float32) + eps)
    bias = beta.astype(jnp.float32) - running_mean.astype(jnp.float32) * scale
    w = jnp.transpose(weight.astype(jnp.float32), (2, 3, 1, 0)).reshape(k * k * C1, C2)
    w = w * scale[None, :]                                          # exact fold
    w = jnp.pad(w, ((0, 0), (0, C2p - C2))).astype(jnp.bfloat16)
    bias_p = jnp.pad(bias, (0, C2p - C2)).reshape(1, C2p)

    # ---- fused conv + BN + Hardswish Pallas kernel --------------------------
    grid = (N, nct, nrt)        # row-tile axis innermost -> weights stay resident
    out = pl.pallas_call(
        _make_kernel(k, s, TH, Wo_pad, TN, C1),
        out_shape=jax.ShapeDtypeStruct((N, Ho_pad, Wo_pad, C2p), jnp.bfloat16),
        grid=grid,
        in_specs=[
            # whole padded image: resident across (j, r), re-DMA'd only per image
            pl.BlockSpec((None, Hp_need, Wp_need, C1), lambda b, j, r: (b, 0, 0, 0)),
            pl.BlockSpec((k * k * C1, TN), lambda b, j, r: (0, j)),
            pl.BlockSpec((1, TN), lambda b, j, r: (0, j)),
        ],
        out_specs=pl.BlockSpec((None, TH, Wo_pad, TN), lambda b, j, r: (b, r, 0, j)),
        compiler_params=pltpu.CompilerParams(
            dimension_semantics=("parallel", "parallel", "parallel")),
        cost_estimate=pl.CostEstimate(
            flops=2 * N * Ho_pad * Wo_pad * C2p * k * k * C1,
            transcendentals=0,
            bytes_accessed=(xp.size * 2 + w.size * 2 + bias_p.size * 4
                            + N * Ho_pad * Wo_pad * C2p * 2)),
    )(xp, w, bias_p)

    # ---- drop row/col/channel padding, back to NCHW f32 --------------------
    # TODO(synk): when the consumer is the next Conv, return NHWC bf16 directly
    #             instead of round-tripping to NCHW f32.
    y = out[:, :Ho, :Wo, :C2]
    return jnp.transpose(y, (0, 3, 1, 2)).astype(jnp.float32)


def _reference(x, weight, gamma, beta, running_mean, running_var, *, k, s, p, eps=1e-5):
    conv = jax.lax.conv_general_dilated(
        x.astype(jnp.float32), weight.astype(jnp.float32),
        window_strides=(s, s), padding=[(p, p), (p, p)],
        dimension_numbers=("NCHW", "OIHW", "NCHW"))
    g = gamma[None, :, None, None]
    b = beta[None, :, None, None]
    m = running_mean[None, :, None, None]
    v = running_var[None, :, None, None]
    y = (conv - m) / jnp.sqrt(v + eps) * g + b
    return y * jnp.clip(y + 3.0, 0.0, 6.0) / 6.0


if __name__ == "__main__":
    # small shapes consistent with Conv(c1=4, c2=8, k=3, s=1) on a 2x4x16x16 input
    N, C1, C2, H, W = 2, 4, 8, 16, 16
    k, s = 3, 1
    p = k // 2  # autopad

    key = jax.random.PRNGKey(0)
    kx, kw, kg, kb, km, kv = jax.random.split(key, 6)

    x = jax.random.normal(kx, (N, C1, H, W), dtype=jnp.float32)
    weight = 0.1 * jax.random.normal(kw, (C2, C1, k, k), dtype=jnp.float32)
    # deterministic synthetic BatchNorm parameters / running stats (eval-mode semantics)
    gamma = 1.0 + 0.1 * jax.random.normal(kg, (C2,), dtype=jnp.float32)
    beta = 0.1 * jax.random.normal(kb, (C2,), dtype=jnp.float32)
    running_mean = 0.1 * jax.random.normal(km, (C2,), dtype=jnp.float32)
    running_var = 1.0 + 0.1 * jax.random.uniform(kv, (C2,), dtype=jnp.float32)

    out = conv_bn_hardswish(x, weight, gamma, beta, running_mean, running_var,
                            k=k, s=s, p=p)
    out = jax.block_until_ready(out)

    ref = _reference(x, weight, gamma, beta, running_mean, running_var, k=k, s=s, p=p)
    assert out.shape == (N, C2, H, W), out.shape
    # bf16 MXU inputs and bf16 writeback (f32 accumulation) -> loosened tolerance
    assert jnp.allclose(out, ref, atol=2e-2, rtol=2e-2), float(jnp.max(jnp.abs(out - ref)))

    print("KERNEL_OK")
</pallas_src>

<mosaic_0001>
module attributes {stable_mosaic.version = 11 : i64} {
  func.func @kernel(%arg0: i32, %arg1: i32, %arg2: i32, %arg3: memref<1x18x18x4xbf16, #tpu.memory_space<vmem>>, %arg4: memref<36x128xbf16, #tpu.memory_space<vmem>>, %arg5: memref<1x128xf32, #tpu.memory_space<vmem>>, %arg6: memref<1x16x16x128xbf16, #tpu.memory_space<vmem>>) attributes {dimension_semantics = [#tpu.dimension_semantics<parallel>, #tpu.dimension_semantics<parallel>, #tpu.dimension_semantics<parallel>], iteration_bounds = array<i64: 2, 1, 1>, scalar_prefetch = 0 : i64, scratch_operands = 0 : i64, tpu.core_type = #tpu.core_type<tc>, window_params = [{transform_indices = @transform_0, window_bounds = array<i64: 1, 18, 18, 4>}, {transform_indices = @transform_1, window_bounds = array<i64: 36, 128>}, {transform_indices = @transform_2, window_bounds = array<i64: 1, 128>}, {transform_indices = @transform_3, window_bounds = array<i64: 1, 16, 16, 128>}]} {
    %c16_i32 = arith.constant 16 : i32
    %0 = arith.muli %arg2, %c16_i32 : i32
    %c0_i32 = arith.constant 0 : i32
    %1 = arith.addi %0, %c0_i32 : i32
    %c0 = arith.constant 0 : index
    %2 = arith.index_cast %1 : i32 to index
    %c0_0 = arith.constant 0 : index
    %c0_1 = arith.constant 0 : index
    %3 = vector.load %arg3[%c0, %2, %c0_0, %c0_1] : memref<1x18x18x4xbf16, #tpu.memory_space<vmem>>, vector<1x16x16x4xbf16>
    %4 = vector.shape_cast %3 : vector<1x16x16x4xbf16> to vector<16x16x4xbf16>
    %5 = vector.shape_cast %4 : vector<16x16x4xbf16> to vector<256x4xbf16>
    %c0_i32_2 = arith.constant 0 : i32
    %6 = arith.addi %0, %c0_i32_2 : i32
    %c0_3 = arith.constant 0 : index
    %7 = arith.index_cast %6 : i32 to index
    %c1 = arith.constant 1 : index
    %c0_4 = arith.constant 0 : index
    %8 = vector.load %arg3[%c0_3, %7, %c1, %c0_4] : memref<1x18x18x4xbf16, #tpu.memory_space<vmem>>, vector<1x16x16x4xbf16>
    %9 = vector.shape_cast %8 : vector<1x16x16x4xbf16> to vector<16x16x4xbf16>
    %10 = vector.shape_cast %9 : vector<16x16x4xbf16> to vector<256x4xbf16>
    %c0_i32_5 = arith.constant 0 : i32
    %11 = arith.addi %0, %c0_i32_5 : i32
    %c0_6 = arith.constant 0 : index
    %12 = arith.index_cast %11 : i32 to index
    %c2 = arith.constant 2 : index
    %c0_7 = arith.constant 0 : index
    %13 = vector.load %arg3[%c0_6, %12, %c2, %c0_7] : memref<1x18x18x4xbf16, #tpu.memory_space<vmem>>, vector<1x16x16x4xbf16>
    %14 = vector.shape_cast %13 : vector<1x16x16x4xbf16> to vector<16x16x4xbf16>
    %15 = vector.shape_cast %14 : vector<16x16x4xbf16> to vector<256x4xbf16>
    %c1_i32 = arith.constant 1 : i32
    %16 = arith.addi %0, %c1_i32 : i32
    %c0_8 = arith.constant 0 : index
    %17 = arith.index_cast %16 : i32 to index
    %c0_9 = arith.constant 0 : index
    %c0_10 = arith.constant 0 : index
    %18 = vector.load %arg3[%c0_8, %17, %c0_9, %c0_10] : memref<1x18x18x4xbf16, #tpu.memory_space<vmem>>, vector<1x16x16x4xbf16>
    %19 = vector.shape_cast %18 : vector<1x16x16x4xbf16> to vector<16x16x4xbf16>
    %20 = vector.shape_cast %19 : vector<16x16x4xbf16> to vector<256x4xbf16>
    %c1_i32_11 = arith.constant 1 : i32
    %21 = arith.addi %0, %c1_i32_11 : i32
    %c0_12 = arith.constant 0 : index
    %22 = arith.index_cast %21 : i32 to index
    %c1_13 = arith.constant 1 : index
    %c0_14 = arith.constant 0 : index
    %23 = vector.load %arg3[%c0_12, %22, %c1_13, %c0_14] : memref<1x18x18x4xbf16, #tpu.memory_space<vmem>>, vector<1x16x16x4xbf16>
    %24 = vector.shape_cast %23 : vector<1x16x16x4xbf16> to vector<16x16x4xbf16>
    %25 = vector.shape_cast %24 : vector<16x16x4xbf16> to vector<256x4xbf16>
    %c1_i32_15 = arith.constant 1 : i32
    %26 = arith.addi %0, %c1_i32_15 : i32
    %c0_16 = arith.constant 0 : index
    %27 = arith.index_cast %26 : i32 to index
    %c2_17 = arith.constant 2 : index
    %c0_18 = arith.constant 0 : index
    %28 = vector.load %arg3[%c0_16, %27, %c2_17, %c0_18] : memref<1x18x18x4xbf16, #tpu.memory_space<vmem>>, vector<1x16x16x4xbf16>
    %29 = vector.shape_cast %28 : vector<1x16x16x4xbf16> to vector<16x16x4xbf16>
    %30 = vector.shape_cast %29 : vector<16x16x4xbf16> to vector<256x4xbf16>
    %c2_i32 = arith.constant 2 : i32
    %31 = arith.addi %0, %c2_i32 : i32
    %c0_19 = arith.constant 0 : index
    %32 = arith.index_cast %31 : i32 to index
    %c0_20 = arith.constant 0 : index
    %c0_21 = arith.constant 0 : index
    %33 = vector.load %arg3[%c0_19, %32, %c0_20, %c0_21] : memref<1x18x18x4xbf16, #tpu.memory_space<vmem>>, vector<1x16x16x4xbf16>
    %34 = vector.shape_cast %33 : vector<1x16x16x4xbf16> to vector<16x16x4xbf16>
    %35 = vector.shape_cast %34 : vector<16x16x4xbf16> to vector<256x4xbf16>
    %c2_i32_22 = arith.constant 2 : i32
    %36 = arith.addi %0, %c2_i32_22 : i32
    %c0_23 = arith.constant 0 : index
    %37 = arith.index_cast %36 : i32 to index
    %c1_24 = arith.constant 1 : index
    %c0_25 = arith.constant 0 : index
    %38 = vector.load %arg3[%c0_23, %37, %c1_24, %c0_25] : memref<1x18x18x4xbf16, #tpu.memory_space<vmem>>, vector<1x16x16x4xbf16>
    %39 = vector.shape_cast %38 : vector<1x16x16x4xbf16> to vector<16x16x4xbf16>
    %40 = vector.shape_cast %39 : vector<16x16x4xbf16> to vector<256x4xbf16>
    %c2_i32_26 = arith.constant 2 : i32
    %41 = arith.addi %0, %c2_i32_26 : i32
    %c0_27 = arith.constant 0 : index
    %42 = arith.index_cast %41 : i32 to index
    %c2_28 = arith.constant 2 : index
    %c0_29 = arith.constant 0 : index
    %43 = vector.load %arg3[%c0_27, %42, %c2_28, %c0_29] : memref<1x18x18x4xbf16, #tpu.memory_space<vmem>>, vector<1x16x16x4xbf16>
    %44 = vector.shape_cast %43 : vector<1x16x16x4xbf16> to vector<16x16x4xbf16>
    %45 = vector.shape_cast %44 : vector<16x16x4xbf16> to vector<256x4xbf16>
    %46 = tpu.concatenate %5, %10, %15, %20, %25, %30, %35, %40, %45 in 1 : vector<256x4xbf16>, vector<256x4xbf16>, vector<256x4xbf16>, vector<256x4xbf16>, vector<256x4xbf16>, vector<256x4xbf16>, vector<256x4xbf16>, vector<256x4xbf16>, vector<256x4xbf16> -> vector<256x36xbf16>
    %c0_30 = arith.constant 0 : index
    %c0_31 = arith.constant 0 : index
    %47 = vector.load %arg4[%c0_30, %c0_31] : memref<36x128xbf16, #tpu.memory_space<vmem>>, vector<36x128xbf16>
    %cst = arith.constant dense<0.000000e+00> : vector<256x128xf32>
    %48 = tpu.matmul %46, %47, %cst {dimension_numbers = #tpu.dot_dimension_numbers<[1], [0], [0], [1], [0, 0, 1, 1], [], []>} : vector<256x36xbf16>, vector<36x128xbf16>, vector<256x128xf32> -> vector<256x128xf32>
    %c0_32 = arith.constant 0 : index
    %c0_33 = arith.constant 0 : index
    %49 = vector.load %arg5[%c0_32, %c0_33] : memref<1x128xf32, #tpu.memory_space<vmem>>, vector<1x128xf32>
    %50 = vector.broadcast %49 : vector<1x128xf32> to vector<256x128xf32>
    %51 = arith.addf %48, %50 : vector<256x128xf32>
    %cst_34 = arith.constant 3.000000e+00 : f32
    %52 = vector.broadcast %cst_34 : f32 to vector<256x128xf32>
    %53 = arith.addf %51, %52 : vector<256x128xf32>
    %cst_35 = arith.constant 0.000000e+00 : f32
    %cst_36 = arith.constant 6.000000e+00 : f32
    %54 = vector.broadcast %cst_35 : f32 to vector<256x128xf32>
    %55 = arith.maximumf %54, %53 : vector<256x128xf32>
    %56 = vector.broadcast %cst_36 : f32 to vector<256x128xf32>
    %57 = arith.minimumf %56, %55 : vector<256x128xf32>
    %58 = arith.mulf %51, %57 : vector<256x128xf32>
    %cst_37 = arith.constant 0.166666672 : f32
    %59 = vector.broadcast %cst_37 : f32 to vector<256x128xf32>
    %60 = arith.mulf %58, %59 : vector<256x128xf32>
    %61 = vector.shape_cast %60 : vector<256x128xf32> to vector<16x16x128xf32>
    %62 = arith.truncf %61 : vector<16x16x128xf32> to vector<16x16x128xbf16>
    %c0_38 = arith.constant 0 : index
    %c0_39 = arith.constant 0 : index
    %c0_40 = arith.constant 0 : index
    %c0_41 = arith.constant 0 : index
    %63 = vector.load %arg6[%c0_38, %c0_39, %c0_40, %c0_41] : memref<1x16x16x128xbf16, #tpu.memory_space<vmem>>, vector<1x16x16x128xbf16>
    %64 = vector.shape_cast %63 : vector<1x16x16x128xbf16> to vector<16x16x128xbf16>
    %65 = vector.shape_cast %62 : vector<16x16x128xbf16> to vector<1x16x16x128xbf16>
    tpu.vector_store %arg6[%c0_38, %c0_39, %c0_40, %c0_41], %65 {strides = array<i32>} : memref<1x16x16x128xbf16, #tpu.memory_space<vmem>>, vector<1x16x16x128xbf16>,
    return
  }
  func.func @transform_0(%arg0: i32, %arg1: i32, %arg2: i32) -> (i32, i32, i32, i32) {
    %c0_i32 = arith.constant 0 : i32
    %c0_i32_0 = arith.constant 0 : i32
    %c0_i32_1 = arith.constant 0 : i32
    %c0_i32_2 = arith.constant 0 : i32
    return %arg0, %c0_i32, %c0_i32_0, %c0_i32_1 : i32, i32, i32, i32
  }
  func.func @transform_1(%arg0: i32, %arg1: i32, %arg2: i32) -> (i32, i32) {
    %c0_i32 = arith.constant 0 : i32
    %c0_i32_0 = arith.constant 0 : i32
    return %c0_i32, %arg1 : i32, i32
  }
  func.func @transform_2(%arg0: i32, %arg1: i32, %arg2: i32) -> (i32, i32) {
    %c0_i32 = arith.constant 0 : i32
    %c0_i32_0 = arith.constant 0 : i32
    return %c0_i32, %arg1 : i32, i32
  }
  func.func @transform_3(%arg0: i32, %arg1: i32, %arg2: i32) -> (i32, i32, i32, i32) {
    %c0_i32 = arith.constant 0 : i32
    %c0_i32_0 = arith.constant 0 : i32
    return %arg0, %arg2, %c0_i32, %arg1 : i32, i32, i32, i32
  }
}

</mosaic_0001>

<llo_original>
// kernel: conv_bn_hardswish.1
$region0: #{conv_bn_hardswish.1}
  #allocation0 [shape = 'u32[]', space=smem, size = 0x4, offset = 0x4, fixed_abs, tag = 'smem constant byte address 0x4 - core index']
  #allocation1 [shape = 'u32[144,128]{1,0:T(1,128)}', space=vmem, size = 0x12000, scoped, tag = 'internal scratch']
  %s0 = inlined_call_operand.vmem [shape: bf16[2,18,18,4], index: 0, kind: input, shape index: {}]
  %s1 = inlined_call_operand.vmem [shape: bf16[36,128], index: 1, kind: input, shape index: {}]
  %s2 = inlined_call_operand.vmem [shape: f32[1,128], index: 2, kind: input, shape index: {}]
  %s3 = inlined_call_operand.vmem [shape: bf16[2,16,16,128], index: 3, kind: output, shape index: {}]
  %s4 = sld [smem:[#allocation0]]
  $region45: #{conv_bn_hardswish.1} parent=0
    _
  %s6 = ssub.s32 1, %s4
  %s7 = scalar_select 0, %s6, %s4
  loop: start=0, step=1, limit=4
  $region2: #{conv_bn_hardswish.1} parent=0 // loop_pre_header
    _
  $region3: #{conv_bn_hardswish.1} parent=0 // loop_header
    %s9 = sphi 0, %s13
    %p10 = scmp.ge.s32.totalorder %s9, 4
    %s16 = sphi 0, %s35
    %s17 = sphi 0, %s31
    %s18 = sphi 0, %s27
    %s19 = sphi 0, %s16
    %s20 = sphi 0, %s17
    %s21 = sphi 0, %s18
    %s22 = sphi 0, %s19
    %s23 = sphi 0, %s20
    %s24 = sphi 0, %s21
    %s38 = sphi 0, %s40
    %s41 = sphi 0, %s38
    %s42 = sphi 0, %s41
    %s58 = sphi 0, %s42
    %s64 = sphi 0, %s66
    %s67 = sphi 0, %s64
    %s68 = sphi 0, %s67
    %s84 = sphi 0, %s68
    %s90 = sphi 0, %s92
    %s93 = sphi 0, %s90
    %s94 = sphi 0, %s93
    %s110 = sphi 0, %s94
    %s120 = sphi 0, %s122
    %s123 = sphi 0, %s120
    %s124 = sphi 0, %s123
    %s140 = sphi 0, %s124
  $region4: #{conv_bn_hardswish.1} parent=0 // loop_header_branch
    %12 = sbr.rel (%p10) target = $region8
  $region5: #{conv_bn_hardswish.1} parent=0 // loop_body
    %s14 = ssub.s32 %s9, 1
    %s15 = ssub.s32 %s9, 2
    %s25 = sadd.s32 1, %s18
    %p26 = scmp.ge.s32.totalorder %s25, 1
    %s27 = scalar_select %p26, 0, %s25
    %s28 = sadd.s32 1, %s17
    %s29 = scalar_select %p26, %s28, %s17
    %p30 = scmp.ge.s32.totalorder %s29, 1
    %s31 = scalar_select %p30, 0, %s29
    %s32 = sadd.s32 1, %s16
    %s33 = scalar_select %p30, %s32, %s16
    %p34 = scmp.ge.s32.totalorder %s33, 2
    %s35 = scalar_select %p34, 0, %s33
    %s36 = ssub.s32 %s16, %s35
    %p37 = scmp.eq.s32.totalorder %s36, 0
    %s39 = sadd.s32 %s38, 1
    %s40 = scalar_select %p37, %s38, %s39
    %p43 = pneg %p37
    %p44 = scmp.eq.s32.totalorder %s9, 1
    %p45 = por %p43, %p44
    %p46 = scmp.ne.s32.totalorder %s38, %s41
    %p47 = scmp.eq.s32.totalorder %s9, 0
    %p48 = por %p46, %p47
    %p49 = scmp.ne.s32.totalorder %s38, %s41
    %p50 = scmp.eq.s32.totalorder %s14, 1
    %p51 = por %p49, %p50
    %p52 = scmp.ne.s32.totalorder %s41, %s42
    %p53 = scmp.eq.s32.totalorder %s14, 0
    %p54 = por %p52, %p53
    %p55 = scmp.ne.s32.totalorder %s41, %s42
    %p56 = scmp.eq.s32.totalorder %s15, 1
    %p57 = por %p55, %p56
    %p59 = scmp.ne.s32.totalorder %s42, %s58
    %p60 = scmp.eq.s32.totalorder %s15, 0
    %p61 = por %p59, %p60
    %s62 = ssub.s32 %s17, %s31
    %p63 = scmp.eq.s32.totalorder %s62, 0
    %s65 = sadd.s32 %s64, 1
    %s66 = scalar_select %p63, %s64, %s65
    %p69 = pneg %p63
    %p70 = scmp.eq.s32.totalorder %s9, 1
    %p71 = por %p69, %p70
    %p72 = scmp.ne.s32.totalorder %s64, %s67
    %p73 = scmp.eq.s32.totalorder %s9, 0
    %p74 = por %p72, %p73
    %p75 = scmp.ne.s32.totalorder %s64, %s67
    %p76 = scmp.eq.s32.totalorder %s14, 1
    %p77 = por %p75, %p76
    %p78 = scmp.ne.s32.totalorder %s67, %s68
    %p79 = scmp.eq.s32.totalorder %s14, 0
    %p80 = por %p78, %p79
    %p81 = scmp.ne.s32.totalorder %s67, %s68
    %p82 = scmp.eq.s32.totalorder %s15, 1
    %p83 = por %p81, %p82
    %p85 = scmp.ne.s32.totalorder %s68, %s84
    %p86 = scmp.eq.s32.totalorder %s15, 0
    %p87 = por %p85, %p86
    %s88 = ssub.s32 %s17, %s31
    %p89 = scmp.eq.s32.totalorder %s88, 0
    %s91 = sadd.s32 %s90, 1
    %s92 = scalar_select %p89, %s90, %s91
    %p95 = pneg %p89
    %p96 = scmp.eq.s32.totalorder %s9, 1
    %p97 = por %p95, %p96
    %p98 = scmp.ne.s32.totalorder %s90, %s93
    %p99 = scmp.eq.s32.totalorder %s9, 0
    %p100 = por %p98, %p99
    %p101 = scmp.ne.s32.totalorder %s90, %s93
    %p102 = scmp.eq.s32.totalorder %s14, 1
    %p103 = por %p101, %p102
    %p104 = scmp.ne.s32.totalorder %s93, %s94
    %p105 = scmp.eq.s32.totalorder %s14, 0
    %p106 = por %p104, %p105
    %p107 = scmp.ne.s32.totalorder %s93, %s94
    %p108 = scmp.eq.s32.totalorder %s15, 1
    %p109 = por %p107, %p108
    %p111 = scmp.ne.s32.totalorder %s94, %s110
    %p112 = scmp.eq.s32.totalorder %s15, 0
    %p113 = por %p111, %p112
    %s114 = ssub.s32 %s16, %s35
    %s115 = ssub.s32 %s18, %s27
    %s116 = sor.u32 %s114, %s115
    %s117 = ssub.s32 %s17, %s31
    %s118 = sor.u32 %s116, %s117
    %p119 = scmp.eq.s32.totalorder %s118, 0
    %s121 = sadd.s32 %s120, 1
    %s122 = scalar_select %p119, %s120, %s121
    %p125 = pneg %p119
    %p126 = scmp.eq.s32.totalorder %s9, 1
    %p127 = por %p125, %p126
    %p128 = scmp.ne.s32.totalorder %s120, %s123
    %p129 = scmp.eq.s32.totalorder %s9, 0
    %p130 = por %p128, %p129
    %p131 = scmp.ne.s32.totalorder %s120, %s123
    %p132 = scmp.eq.s32.totalorder %s14, 1
    %p133 = por %p131, %p132
    %p134 = scmp.ne.s32.totalorder %s123, %s124
    %p135 = scmp.eq.s32.totalorder %s14, 0
    %p136 = por %p134, %p135
    %p137 = scmp.ne.s32.totalorder %s123, %s124
    %p138 = scmp.eq.s32.totalorder %s15, 1
    %p139 = por %p137, %p138
    %p141 = scmp.ne.s32.totalorder %s124, %s140
    %p142 = scmp.eq.s32.totalorder %s15, 0
    %p143 = por %p141, %p142
    %p144 = scmp.le.s32.totalorder 1, %s9
    %p145 = scmp.lt.s32.totalorder %s9, 3
    %p146 = pnand %p144, %p145
    %p147 = pneg %p146
    // Predicated region
    $region9: #{conv_bn_hardswish.1} parent=5 // pred_check
      _
    $region10: #{conv_bn_hardswish.1} parent=5 // pred_check_branch
      %149 = sbr.rel (%p146) target = $region12
    $region11: #{conv_bn_hardswish.1} parent=5 // pred_region
      %s150 = ssub.s32 %s9, 1
      // Predicated region
      $region13: #{conv_bn_hardswish.1} parent=11 // pred_check
        %p151 = pneg %p80
      $region14: #{conv_bn_hardswish.1} parent=11 // pred_check_branch
        %153 = sbr.rel (%p151) target = $region16
      $region15: #{conv_bn_hardswish.1} parent=11 // pred_region
        %p154 = scmp.lt.s32.totalorder %s20, 0
        %s155 = scalar_select %p154, %s20, 0
        %s156 = smul.addr %s155, 4
        %s157 = scalar_lea.vmem %s1, %s156
      $region16: #{conv_bn_hardswish.1} parent=11 // pred_fallthru
        _
      // Predicated region
      $region17: #{conv_bn_hardswish.1} parent=11 // pred_check
        %p158 = pneg %p106
      $region18: #{conv_bn_hardswish.1} parent=11 // pred_check_branch
        %160 = sbr.rel (%p158) target = $region20
      $region19: #{conv_bn_hardswish.1} parent=11 // pred_region
        %p161 = scmp.lt.s32.totalorder %s20, 0
        %s162 = scalar_select %p161, %s20, 0
        %s163 = scalar_lea.vmem %s2, %s162
      $region20: #{conv_bn_hardswish.1} parent=11 // pred_fallthru
        _
    $region12: #{conv_bn_hardswish.1} parent=5 // pred_fallthru
      _
    %p164 = scmp.lt.s32.totalorder %s9, 2
    // Predicated region
    $region21: #{conv_bn_hardswish.1} parent=5 // pred_check
      %p165 = pneg %p164
    $region22: #{conv_bn_hardswish.1} parent=5 // pred_check_branch
      %167 = sbr.rel (%p165) target = $region24
    $region23: #{conv_bn_hardswish.1} parent=5 // pred_region
      // Predicated region
      $region25: #{conv_bn_hardswish.1} parent=23 // pred_check
        %p168 = pneg %p48
      $region26: #{conv_bn_hardswish.1} parent=23 // pred_check_branch
        %170 = sbr.rel (%p168) target = $region28
      $region27: #{conv_bn_hardswish.1} parent=23 // pred_region
        %p171 = scmp.lt.s32.totalorder %s16, 1
        %s172 = scalar_select %p171, %s16, 1
        %s173 = smul.addr %s172, 54
        %s174 = smul.addr %s173, 4
        %s175 = scalar_lea.vmem %s0, %s174
      $region28: #{conv_bn_hardswish.1} parent=23 // pred_fallthru
        _
    $region24: #{conv_bn_hardswish.1} parent=5 // pred_fallthru
      _
    %p176 = scmp.le.s32.totalorder 1, %s9
    %p177 = scmp.lt.s32.totalorder %s9, 3
    %p178 = pnand %p176, %p177
    %p179 = pneg %p178
    // Predicated region
    $region29: #{conv_bn_hardswish.1} parent=5 // pred_check
      _
    $region30: #{conv_bn_hardswish.1} parent=5 // pred_check_branch
      %181 = sbr.rel (%p178) target = $region32
    $region31: #{conv_bn_hardswish.1} parent=5 // pred_region
      %s182 = ssub.s32 %s9, 1
      %p183 = scmp.lt.s32.totalorder %s19, 1
      %s184 = scalar_select %p183, %s19, 1
      %s185 = smul.addr %s184, 54
      %s186 = smul.addr %s185, 4
      %s187 = scalar_lea.vmem %s0, %s186
      %p188 = pneg %p54
      %p189 = pneg %p51
      %p190 = scmp.lt.s32.totalorder %s20, 0
      %s191 = scalar_select %p190, %s20, 0
      %s192 = smul.addr %s191, 4
      %s193 = scalar_lea.vmem %s1, %s192
      %p194 = pneg %p80
      %p195 = pneg %p77
      %p196 = scmp.lt.s32.totalorder %s20, 0
      %s197 = scalar_select %p196, %s20, 0
      %s198 = scalar_lea.vmem %s2, %s197
      %p199 = pneg %p106
      %p200 = pneg %p103
      %p201 = pneg %p136
      %p202 = pneg %p133
      %s203 = smul.u32 16, %s21
      %p204 = scmp.lt.s32.totalorder %s19, 1
      %s205 = scalar_select %p204, %s19, 1
      %p206 = scmp.lt.s32.totalorder %s203, 15
      %s207 = scalar_select %p206, %s203, 15
      %p208 = scmp.lt.s32.totalorder %s20, 0
      %s209 = scalar_select %p208, %s20, 0
      %s210 = smul.addr %s207, 2
      %s211 = sadd.s32 %s209, %s210
      %s212 = smul.addr %s205, 32
      %s213 = sadd.s32 %s211, %s212
      %s214 = smul.addr %s213, 4
      %s215 = scalar_lea.vmem %s3, %s214
      %p216 = scmp.lt.s32.totalorder %s19, 1
      %s217 = scalar_select %p216, %s19, 1
      %s218 = smul.addr %s217, 54
      %s219 = smul.addr %s218, 4
      %s220 = scalar_lea.vmem %s0, %s219
      %p221 = scmp.lt.s32.totalorder %s20, 0
      %s222 = scalar_select %p221, %s20, 0
      %s223 = smul.addr %s222, 4
      %s224 = scalar_lea.vmem %s1, %s223
      %p225 = scmp.lt.s32.totalorder %s20, 0
      %s226 = scalar_select %p225, %s20, 0
      %s227 = scalar_lea.vmem %s2, %s226
      %s228 = smul.u32 16, %s21
      %p229 = scmp.lt.s32.totalorder %s19, 1
      %s230 = scalar_select %p229, %s19, 1
      %p231 = scmp.lt.s32.totalorder %s228, 15
      %s232 = scalar_select %p231, %s228, 15
      %p233 = scmp.lt.s32.totalorder %s20, 0
      %s234 = scalar_select %p233, %s20, 0
      %s235 = smul.addr %s232, 2
      %s236 = sadd.s32 %s234, %s235
      %s237 = smul.addr %s230, 32
      %s238 = sadd.s32 %s236, %s237
      %s239 = smul.addr %s238, 4
      %s240 = scalar_lea.vmem %s3, %s239
      %s241 = smul.u32 16, %s21
      %s243 = smul.u32 %s21, 16
      %s244 = smul.u32 %s243, 3
      %s245 = smul.addr %s244, 4
      %s246 = scalar_lea.vmem %s220, %s245
      %v247 = vld [vmem:[%s246] sm:$0xf]
      %v248 = vld [vmem:[%s246 + $0x4] sm:$0xf]
      %v249 = vld [vmem:[%s246 + $0xc] sm:$0xf]
      %v250 = vld [vmem:[%s246 + $0x10] sm:$0xf]
      %v251 = vld [vmem:[%s246 + $0x18] sm:$0xf]
      %v252 = vld [vmem:[%s246 + $0x1c] sm:$0xf]
      %v253 = vld [vmem:[%s246 + $0x24] sm:$0xf]
      %v254 = vld [vmem:[%s246 + $0x28] sm:$0xf]
      %v255 = vld [vmem:[%s246 + $0x30] sm:$0xf]
      %v256 = vld [vmem:[%s246 + $0x34] sm:$0xf]
      %v257 = vld [vmem:[%s246 + $0x3c] sm:$0xf]
      %v258 = vld [vmem:[%s246 + $0x40] sm:$0xf]
      %v259 = vld [vmem:[%s246 + $0x48] sm:$0xf]
      %v260 = vld [vmem:[%s246 + $0x4c] sm:$0xf]
      %v261 = vld [vmem:[%s246 + $0x54] sm:$0xf]
      %v262 = vld [vmem:[%s246 + $0x58] sm:$0xf]
      %v263 = vld [vmem:[%s246 + $0x60] sm:$0xf]
      %v264 = vld [vmem:[%s246 + $0x64] sm:$0xf]
      %v265 = vld [vmem:[%s246 + $0x6c] sm:$0xf]
      %v266 = vld [vmem:[%s246 + $0x70] sm:$0xf]
      %v267 = vld [vmem:[%s246 + $0x78] sm:$0xf]
      %v268 = vld [vmem:[%s246 + $0x7c] sm:$0xf]
      %v269 = vld [vmem:[%s246 + $0x84] sm:$0xf]
      %v270 = vld [vmem:[%s246 + $0x88] sm:$0xf]
      %v271 = vld [vmem:[%s246 + $0x90] sm:$0xf]
      %v272 = vld [vmem:[%s246 + $0x94] sm:$0xf]
      %v273 = vld [vmem:[%s246 + $0x9c] sm:$0xf]
      %v274 = vld [vmem:[%s246 + $0xa0] sm:$0xf]
      %v275 = vld [vmem:[%s246 + $0xa8] sm:$0xf]
      %v276 = vld [vmem:[%s246 + $0xac] sm:$0xf]
      %v277 = vld [vmem:[%s246 + $0xb4] sm:$0xf]
      %v278 = vld [vmem:[%s246 + $0xb8] sm:$0xf]
      %v279 = vld [vmem:[%s246 + $0x8] sm:$0x1]
      %v280 = vld [vmem:[%s246 + $0x14] sm:$0x1]
      %v281 = vld [vmem:[%s246 + $0x20] sm:$0x1]
      %v282 = vld [vmem:[%s246 + $0x2c] sm:$0x1]
      %v283 = vld [vmem:[%s246 + $0x38] sm:$0x1]
      %v284 = vld [vmem:[%s246 + $0x44] sm:$0x1]
      %v285 = vld [vmem:[%s246 + $0x50] sm:$0x1]
      %v286 = vld [vmem:[%s246 + $0x5c] sm:$0x1]
      %v287 = vld [vmem:[%s246 + $0x68] sm:$0x1]
      %v288 = vld [vmem:[%s246 + $0x74] sm:$0x1]
      %v289 = vld [vmem:[%s246 + $0x80] sm:$0x1]
      %v290 = vld [vmem:[%s246 + $0x8c] sm:$0x1]
      %v291 = vld [vmem:[%s246 + $0x98] sm:$0x1]
      %v292 = vld [vmem:[%s246 + $0xa4] sm:$0x1]
      %v293 = vld [vmem:[%s246 + $0xb0] sm:$0x1]
      %v294 = vld [vmem:[%s246 + $0xbc] sm:$0x1]
      %vm295 = vsmask.f32 3328
      %vm296 = vsmask.f32 7440
      %vm297 = vmor %vm295, %vm296
      %v299 = vshrl.u32 %v247, 16
      %v301 = vrot.slane %v299, 4
      %v302 = vshll.u32 %v247, 16
      %v304 = vrot.slane %v302, 5
      %v305 = vor.u32 %v301, %v304
      %v306 = vrot.slane %v305, 4
      %v308 = vshll.u32 %v248, 16
      %v310 = vrot.slane %v308, 5
      %v311 = vsel %vm297, %v306, %v310
      %v312 = vshrl.u32 %v248, 16
      %v314 = vrot.slane %v312, 4
      %v315 = vor.u32 %v314, %v310
      %v316 = vrot.slane %v315, 4
      %v318 = vshll.u32 %v279, 16
      %v320 = vrot.slane %v318, 5
      %v321 = vsel %vm297, %v316, %v320
      %v323 = vshrl.u32 %v249, 16
      %v325 = vrot.slane %v323, 4
      %v326 = vshll.u32 %v249, 16
      %v328 = vrot.slane %v326, 5
      %v329 = vor.u32 %v325, %v328
      %v330 = vrot.slane %v329, 4
      %v332 = vshll.u32 %v250, 16
      %v334 = vrot.slane %v332, 5
      %v335 = vsel %vm297, %v330, %v334
      %v336 = vshrl.u32 %v250, 16
      %v338 = vrot.slane %v336, 4
      %v339 = vor.u32 %v338, %v334
      %v340 = vrot.slane %v339, 4
      %v342 = vshll.u32 %v280, 16
      %v344 = vrot.slane %v342, 5
      %v345 = vsel %vm297, %v340, %v344
      %v347 = vshrl.u32 %v251, 16
      %v349 = vrot.slane %v347, 4
      %v350 = vshll.u32 %v251, 16
      %v352 = vrot.slane %v350, 5
      %v353 = vor.u32 %v349, %v352
      %v354 = vrot.slane %v353, 4
      %v356 = vshll.u32 %v252, 16
      %v358 = vrot.slane %v356, 5
      %v359 = vsel %vm297, %v354, %v358
      %v360 = vshrl.u32 %v252, 16
      %v362 = vrot.slane %v360, 4
      %v363 = vor.u32 %v362, %v358
      %v364 = vrot.slane %v363, 4
      %v366 = vshll.u32 %v281, 16
      %v368 = vrot.slane %v366, 5
      %v369 = vsel %vm297, %v364, %v368
      %v371 = vshrl.u32 %v253, 16
      %v373 = vrot.slane %v371, 4
      %v374 = vshll.u32 %v253, 16
      %v376 = vrot.slane %v374, 5
      %v377 = vor.u32 %v373, %v376
      %v378 = vrot.slane %v377, 4
      %v380 = vshll.u32 %v254, 16
      %v382 = vrot.slane %v380, 5
      %v383 = vsel %vm297, %v378, %v382
      %v384 = vshrl.u32 %v254, 16
      %v386 = vrot.slane %v384, 4
      %v387 = vor.u32 %v386, %v382
      %v388 = vrot.slane %v387, 4
      %v390 = vshll.u32 %v282, 16
      %v392 = vrot.slane %v390, 5
      %v393 = vsel %vm297, %v388, %v392
      %v395 = vshrl.u32 %v255, 16
      %v397 = vrot.slane %v395, 4
      %v398 = vshll.u32 %v255, 16
      %v400 = vrot.slane %v398, 5
      %v401 = vor.u32 %v397, %v400
      %v402 = vrot.slane %v401, 4
      %v404 = vshll.u32 %v256, 16
      %v406 = vrot.slane %v404, 5
      %v407 = vsel %vm297, %v402, %v406
      %v408 = vshrl.u32 %v256, 16
      %v410 = vrot.slane %v408, 4
      %v411 = vor.u32 %v410, %v406
      %v412 = vrot.slane %v411, 4
      %v414 = vshll.u32 %v283, 16
      %v416 = vrot.slane %v414, 5
      %v417 = vsel %vm297, %v412, %v416
      %v419 = vshrl.u32 %v257, 16
      %v421 = vrot.slane %v419, 4
      %v422 = vshll.u32 %v257, 16
      %v424 = vrot.slane %v422, 5
      %v425 = vor.u32 %v421, %v424
      %v426 = vrot.slane %v425, 4
      %v428 = vshll.u32 %v258, 16
      %v430 = vrot.slane %v428, 5
      %v431 = vsel %vm297, %v426, %v430
      %v432 = vshrl.u32 %v258, 16
      %v434 = vrot.slane %v432, 4
      %v435 = vor.u32 %v434, %v430
      %v436 = vrot.slane %v435, 4
      %v438 = vshll.u32 %v284, 16
      %v440 = vrot.slane %v438, 5
      %v441 = vsel %vm297, %v436, %v440
      %v443 = vshrl.u32 %v259, 16
      %v445 = vrot.slane %v443, 4
      %v446 = vshll.u32 %v259, 16
      %v448 = vrot.slane %v446, 5
      %v449 = vor.u32 %v445, %v448
      %v450 = vrot.slane %v449, 4
      %v452 = vshll.u32 %v260, 16
      %v454 = vrot.slane %v452, 5
      %v455 = vsel %vm297, %v450, %v454
      %v456 = vshrl.u32 %v260, 16
      %v458 = vrot.slane %v456, 4
      %v459 = vor.u32 %v458, %v454
      %v460 = vrot.slane %v459, 4
      %v462 = vshll.u32 %v285, 16
      %v464 = vrot.slane %v462, 5
      %v465 = vsel %vm297, %v460, %v464
      %v467 = vshrl.u32 %v261, 16
      %v469 = vrot.slane %v467, 4
      %v470 = vshll.u32 %v261, 16
      %v472 = vrot.slane %v470, 5
      %v473 = vor.u32 %v469, %v472
      %v474 = vrot.slane %v473, 4
      %v476 = vshll.u32 %v262, 16
      %v478 = vrot.slane %v476, 5
      %v479 = vsel %vm297, %v474, %v478
      %v480 = vshrl.u32 %v262, 16
      %v482 = vrot.slane %v480, 4
      %v483 = vor.u32 %v482, %v478
      %v484 = vrot.slane %v483, 4
      %v486 = vshll.u32 %v286, 16
      %v488 = vrot.slane %v486, 5
      %v489 = vsel %vm297, %v484, %v488
      %v491 = vshrl.u32 %v263, 16
      %v493 = vrot.slane %v491, 4
      %v494 = vshll.u32 %v263, 16
      %v496 = vrot.slane %v494, 5
      %v497 = vor.u32 %v493, %v496
      %v498 = vrot.slane %v497, 4
      %v500 = vshll.u32 %v264, 16
      %v502 = vrot.slane %v500, 5
      %v503 = vsel %vm297, %v498, %v502
      %v504 = vshrl.u32 %v264, 16
      %v506 = vrot.slane %v504, 4
      %v507 = vor.u32 %v506, %v502
      %v508 = vrot.slane %v507, 4
      %v510 = vshll.u32 %v287, 16
      %v512 = vrot.slane %v510, 5
      %v513 = vsel %vm297, %v508, %v512
      %v515 = vshrl.u32 %v265, 16
      %v517 = vrot.slane %v515, 4
      %v518 = vshll.u32 %v265, 16
      %v520 = vrot.slane %v518, 5
      %v521 = vor.u32 %v517, %v520
      %v522 = vrot.slane %v521, 4
      %v524 = vshll.u32 %v266, 16
      %v526 = vrot.slane %v524, 5
      %v527 = vsel %vm297, %v522, %v526
      %v528 = vshrl.u32 %v266, 16
      %v530 = vrot.slane %v528, 4
      %v531 = vor.u32 %v530, %v526
      %v532 = vrot.slane %v531, 4
      %v534 = vshll.u32 %v288, 16
      %v536 = vrot.slane %v534, 5
      %v537 = vsel %vm297, %v532, %v536
      %v539 = vshrl.u32 %v267, 16
      %v541 = vrot.slane %v539, 4
      %v542 = vshll.u32 %v267, 16
      %v544 = vrot.slane %v542, 5
      %v545 = vor.u32 %v541, %v544
      %v546 = vrot.slane %v545, 4
      %v548 = vshll.u32 %v268, 16
      %v550 = vrot.slane %v548, 5
      %v551 = vsel %vm297, %v546, %v550
      %v552 = vshrl.u32 %v268, 16
      %v554 = vrot.slane %v552, 4
      %v555 = vor.u32 %v554, %v550
      %v556 = vrot.slane %v555, 4
      %v558 = vshll.u32 %v289, 16
      %v560 = vrot.slane %v558, 5
      %v561 = vsel %vm297, %v556, %v560
      %v563 = vshrl.u32 %v269, 16
      %v565 = vrot.slane %v563, 4
      %v566 = vshll.u32 %v269, 16
      %v568 = vrot.slane %v566, 5
      %v569 = vor.u32 %v565, %v568
      %v570 = vrot.slane %v569, 4
      %v572 = vshll.u32 %v270, 16
      %v574 = vrot.slane %v572, 5
      %v575 = vsel %vm297, %v570, %v574
      %v576 = vshrl.u32 %v270, 16
      %v578 = vrot.slane %v576, 4
      %v579 = vor.u32 %v578, %v574
      %v580 = vrot.slane %v579, 4
      %v582 = vshll.u32 %v290, 16
      %v584 = vrot.slane %v582, 5
      %v585 = vsel %vm297, %v580, %v584
      %v587 = vshrl.u32 %v271, 16
      %v589 = vrot.slane %v587, 4
      %v590 = vshll.u32 %v271, 16
      %v592 = vrot.slane %v590, 5
      %v593 = vor.u32 %v589, %v592
      %v594 = vrot.slane %v593, 4
      %v596 = vshll.u32 %v272, 16
      %v598 = vrot.slane %v596, 5
      %v599 = vsel %vm297, %v594, %v598
      %v600 = vshrl.u32 %v272, 16
      %v602 = vrot.slane %v600, 4
      %v603 = vor.u32 %v602, %v598
      %v604 = vrot.slane %v603, 4
      %v606 = vshll.u32 %v291, 16
      %v608 = vrot.slane %v606, 5
      %v609 = vsel %vm297, %v604, %v608
      %v611 = vshrl.u32 %v273, 16
      %v613 = vrot.slane %v611, 4
      %v614 = vshll.u32 %v273, 16
      %v616 = vrot.slane %v614, 5
      %v617 = vor.u32 %v613, %v616
      %v618 = vrot.slane %v617, 4
      %v620 = vshll.u32 %v274, 16
      %v622 = vrot.slane %v620, 5
      %v623 = vsel %vm297, %v618, %v622
      %v624 = vshrl.u32 %v274, 16
      %v626 = vrot.slane %v624, 4
      %v627 = vor.u32 %v626, %v622
      %v628 = vrot.slane %v627, 4
      %v630 = vshll.u32 %v292, 16
      %v632 = vrot.slane %v630, 5
      %v633 = vsel %vm297, %v628, %v632
      %v635 = vshrl.u32 %v275, 16
      %v637 = vrot.slane %v635, 4
      %v638 = vshll.u32 %v275, 16
      %v640 = vrot.slane %v638, 5
      %v641 = vor.u32 %v637, %v640
      %v642 = vrot.slane %v641, 4
      %v644 = vshll.u32 %v276, 16
      %v646 = vrot.slane %v644, 5
      %v647 = vsel %vm297, %v642, %v646
      %v648 = vshrl.u32 %v276, 16
      %v650 = vrot.slane %v648, 4
      %v651 = vor.u32 %v650, %v646
      %v652 = vrot.slane %v651, 4
      %v654 = vshll.u32 %v293, 16
      %v656 = vrot.slane %v654, 5
      %v657 = vsel %vm297, %v652, %v656
      %v659 = vshrl.u32 %v277, 16
      %v661 = vrot.slane %v659, 4
      %v662 = vshll.u32 %v277, 16
      %v664 = vrot.slane %v662, 5
      %v665 = vor.u32 %v661, %v664
      %v666 = vrot.slane %v665, 4
      %v668 = vshll.u32 %v278, 16
      %v670 = vrot.slane %v668, 5
      %v671 = vsel %vm297, %v666, %v670
      %v672 = vshrl.u32 %v278, 16
      %v674 = vrot.slane %v672, 4
      %v675 = vor.u32 %v674, %v670
      %v676 = vrot.slane %v675, 4
      %v678 = vshll.u32 %v294, 16
      %v680 = vrot.slane %v678, 5
      %v681 = vsel %vm297, %v676, %v680
      %v682 = vld [vmem:[%s246] sm:$0xe]
      %v683 = vld [vmem:[%s246 + $0xc] sm:$0xe]
      %v684 = vld [vmem:[%s246 + $0x18] sm:$0xe]
      %v685 = vld [vmem:[%s246 + $0x24] sm:$0xe]
      %v686 = vld [vmem:[%s246 + $0x30] sm:$0xe]
      %v687 = vld [vmem:[%s246 + $0x3c] sm:$0xe]
      %v688 = vld [vmem:[%s246 + $0x48] sm:$0xe]
      %v689 = vld [vmem:[%s246 + $0x54] sm:$0xe]
      %v690 = vld [vmem:[%s246 + $0x60] sm:$0xe]
      %v691 = vld [vmem:[%s246 + $0x6c] sm:$0xe]
      %v692 = vld [vmem:[%s246 + $0x78] sm:$0xe]
      %v693 = vld [vmem:[%s246 + $0x84] sm:$0xe]
      %v694 = vld [vmem:[%s246 + $0x90] sm:$0xe]
      %v695 = vld [vmem:[%s246 + $0x9c] sm:$0xe]
      %v696 = vld [vmem:[%s246 + $0xa8] sm:$0xe]
      %v697 = vld [vmem:[%s246 + $0xb4] sm:$0xe]
      %vm746 = vcmask 1042432
      %vm747 = vcmask 1046532
      %vm748 = vmor %vm746, %vm747
      %v749 = vrot.slane %v682, 5
      %v750 = vrot.slane %v749, 4
      %v751 = vrot.slane %v248, 5
      %v752 = vsel %vm748, %v750, %v751
      %v753 = vrot.slane %v751, 4
      %v754 = vrot.slane %v279, 5
      %v755 = vsel %vm748, %v753, %v754
      %v756 = vrot.slane %v683, 5
      %v757 = vrot.slane %v756, 4
      %v758 = vrot.slane %v250, 5
      %v759 = vsel %vm748, %v757, %v758
      %v760 = vrot.slane %v758, 4
      %v761 = vrot.slane %v280, 5
      %v762 = vsel %vm748, %v760, %v761
      %v763 = vrot.slane %v684, 5
      %v764 = vrot.slane %v763, 4
      %v765 = vrot.slane %v252, 5
      %v766 = vsel %vm748, %v764, %v765
      %v767 = vrot.slane %v765, 4
      %v768 = vrot.slane %v281, 5
      %v769 = vsel %vm748, %v767, %v768
      %v770 = vrot.slane %v685, 5
      %v771 = vrot.slane %v770, 4
      %v772 = vrot.slane %v254, 5
      %v773 = vsel %vm748, %v771, %v772
      %v774 = vrot.slane %v772, 4
      %v775 = vrot.slane %v282, 5
      %v776 = vsel %vm748, %v774, %v775
      %v777 = vrot.slane %v686, 5
      %v778 = vrot.slane %v777, 4
      %v779 = vrot.slane %v256, 5
      %v780 = vsel %vm748, %v778, %v779
      %v781 = vrot.slane %v779, 4
      %v782 = vrot.slane %v283, 5
      %v783 = vsel %vm748, %v781, %v782
      %v784 = vrot.slane %v687, 5
      %v785 = vrot.slane %v784, 4
      %v786 = vrot.slane %v258, 5
      %v787 = vsel %vm748, %v785, %v786
      %v788 = vrot.slane %v786, 4
      %v789 = vrot.slane %v284, 5
      %v790 = vsel %vm748, %v788, %v789
      %v791 = vrot.slane %v688, 5
      %v792 = vrot.slane %v791, 4
      %v793 = vrot.slane %v260, 5
      %v794 = vsel %vm748, %v792, %v793
      %v795 = vrot.slane %v793, 4
      %v796 = vrot.slane %v285, 5
      %v797 = vsel %vm748, %v795, %v796
      %v798 = vrot.slane %v689, 5
      %v799 = vrot.slane %v798, 4
      %v800 = vrot.slane %v262, 5
      %v801 = vsel %vm748, %v799, %v800
      %v802 = vrot.slane %v800, 4
      %v803 = vrot.slane %v286, 5
      %v804 = vsel %vm748, %v802, %v803
      %v805 = vrot.slane %v690, 5
      %v806 = vrot.slane %v805, 4
      %v807 = vrot.slane %v264, 5
      %v808 = vsel %vm748, %v806, %v807
      %v809 = vrot.slane %v807, 4
      %v810 = vrot.slane %v287, 5
      %v811 = vsel %vm748, %v809, %v810
      %v812 = vrot.slane %v691, 5
      %v813 = vrot.slane %v812, 4
      %v814 = vrot.slane %v266, 5
      %v815 = vsel %vm748, %v813, %v814
      %v816 = vrot.slane %v814, 4
      %v817 = vrot.slane %v288, 5
      %v818 = vsel %vm748, %v816, %v817
      %v819 = vrot.slane %v692, 5
      %v820 = vrot.slane %v819, 4
      %v821 = vrot.slane %v268, 5
      %v822 = vsel %vm748, %v820, %v821
      %v823 = vrot.slane %v821, 4
      %v824 = vrot.slane %v289, 5
      %v825 = vsel %vm748, %v823, %v824
      %v826 = vrot.slane %v693, 5
      %v827 = vrot.slane %v826, 4
      %v828 = vrot.slane %v270, 5
      %v829 = vsel %vm748, %v827, %v828
      %v830 = vrot.slane %v828, 4
      %v831 = vrot.slane %v290, 5
      %v832 = vsel %vm748, %v830, %v831
      %v833 = vrot.slane %v694, 5
      %v834 = vrot.slane %v833, 4
      %v835 = vrot.slane %v272, 5
      %v836 = vsel %vm748, %v834, %v835
      %v837 = vrot.slane %v835, 4
      %v838 = vrot.slane %v291, 5
      %v839 = vsel %vm748, %v837, %v838
      %v840 = vrot.slane %v695, 5
      %v841 = vrot.slane %v840, 4
      %v842 = vrot.slane %v274, 5
      %v843 = vsel %vm748, %v841, %v842
      %v844 = vrot.slane %v842, 4
      %v845 = vrot.slane %v292, 5
      %v846 = vsel %vm748, %v844, %v845
      %v847 = vrot.slane %v696, 5
      %v848 = vrot.slane %v847, 4
      %v849 = vrot.slane %v276, 5
      %v850 = vsel %vm748, %v848, %v849
      %v851 = vrot.slane %v849, 4
      %v852 = vrot.slane %v293, 5
      %v853 = vsel %vm748, %v851, %v852
      %v854 = vrot.slane %v697, 5
      %v855 = vrot.slane %v854, 4
      %v856 = vrot.slane %v278, 5
      %v857 = vsel %vm748, %v855, %v856
      %v858 = vrot.slane %v856, 4
      %v859 = vrot.slane %v294, 5
      %v860 = vsel %vm748, %v858, %v859
      %s861 = sadd.s32 %s243, 1
      %s862 = smul.u32 %s861, 3
      %s863 = smul.addr %s862, 4
      %s864 = scalar_lea.vmem %s220, %s863
      %v865 = vld [vmem:[%s864] sm:$0xf]
      %v866 = vld [vmem:[%s864 + $0x4] sm:$0xf]
      %v867 = vld [vmem:[%s864 + $0xc] sm:$0xf]
      %v868 = vld [vmem:[%s864 + $0x10] sm:$0xf]
      %v869 = vld [vmem:[%s864 + $0x18] sm:$0xf]
      %v870 = vld [vmem:[%s864 + $0x1c] sm:$0xf]
      %v871 = vld [vmem:[%s864 + $0x24] sm:$0xf]
      %v872 = vld [vmem:[%s864 + $0x28] sm:$0xf]
      %v873 = vld [vmem:[%s864 + $0x30] sm:$0xf]
      %v874 = vld [vmem:[%s864 + $0x34] sm:$0xf]
      %v875 = vld [vmem:[%s864 + $0x3c] sm:$0xf]
      %v876 = vld [vmem:[%s864 + $0x40] sm:$0xf]
      %v877 = vld [vmem:[%s864 + $0x48] sm:$0xf]
      %v878 = vld [vmem:[%s864 + $0x4c] sm:$0xf]
      %v879 = vld [vmem:[%s864 + $0x54] sm:$0xf]
      %v880 = vld [vmem:[%s864 + $0x58] sm:$0xf]
      %v881 = vld [vmem:[%s864 + $0x60] sm:$0xf]
      %v882 = vld [vmem:[%s864 + $0x64] sm:$0xf]
      %v883 = vld [vmem:[%s864 + $0x6c] sm:$0xf]
      %v884 = vld [vmem:[%s864 + $0x70] sm:$0xf]
      %v885 = vld [vmem:[%s864 + $0x78] sm:$0xf]
      %v886 = vld [vmem:[%s864 + $0x7c] sm:$0xf]
      %v887 = vld [vmem:[%s864 + $0x84] sm:$0xf]
      %v888 = vld [vmem:[%s864 + $0x88] sm:$0xf]
      %v889 = vld [vmem:[%s864 + $0x90] sm:$0xf]
      %v890 = vld [vmem:[%s864 + $0x94] sm:$0xf]
      %v891 = vld [vmem:[%s864 + $0x9c] sm:$0xf]
      %v892 = vld [vmem:[%s864 + $0xa0] sm:$0xf]
      %v893 = vld [vmem:[%s864 + $0xa8] sm:$0xf]
      %v894 = vld [vmem:[%s864 + $0xac] sm:$0xf]
      %v895 = vld [vmem:[%s864 + $0xb4] sm:$0xf]
      %v896 = vld [vmem:[%s864 + $0xb8] sm:$0xf]
      %v897 = vld [vmem:[%s864 + $0x8] sm:$0x1]
      %v898 = vld [vmem:[%s864 + $0x14] sm:$0x1]
      %v899 = vld [vmem:[%s864 + $0x20] sm:$0x1]
      %v900 = vld [vmem:[%s864 + $0x2c] sm:$0x1]
      %v901 = vld [vmem:[%s864 + $0x38] sm:$0x1]
      %v902 = vld [vmem:[%s864 + $0x44] sm:$0x1]
      %v903 = vld [vmem:[%s864 + $0x50] sm:$0x1]
      %v904 = vld [vmem:[%s864 + $0x5c] sm:$0x1]
      %v905 = vld [vmem:[%s864 + $0x68] sm:$0x1]
      %v906 = vld [vmem:[%s864 + $0x74] sm:$0x1]
      %v907 = vld [vmem:[%s864 + $0x80] sm:$0x1]
      %v908 = vld [vmem:[%s864 + $0x8c] sm:$0x1]
      %v909 = vld [vmem:[%s864 + $0x98] sm:$0x1]
      %v910 = vld [vmem:[%s864 + $0xa4] sm:$0x1]
      %v911 = vld [vmem:[%s864 + $0xb0] sm:$0x1]
      %v912 = vld [vmem:[%s864 + $0xbc] sm:$0x1]
      %v914 = vshrl.u32 %v865, 16
      %v916 = vrot.slane %v914, 4
      %v917 = vshll.u32 %v865, 16
      %v919 = vrot.slane %v917, 5
      %v920 = vor.u32 %v916, %v919
      %v921 = vrot.slane %v920, 4
      %v923 = vshll.u32 %v866, 16
      %v925 = vrot.slane %v923, 5
      %v926 = vsel %vm297, %v921, %v925
      %v927 = vshrl.u32 %v866, 16
      %v929 = vrot.slane %v927, 4
      %v930 = vor.u32 %v929, %v925
      %v931 = vrot.slane %v930, 4
      %v933 = vshll.u32 %v897, 16
      %v935 = vrot.slane %v933, 5
      %v936 = vsel %vm297, %v931, %v935
      %v938 = vshrl.u32 %v867, 16
      %v940 = vrot.slane %v938, 4
      %v941 = vshll.u32 %v867, 16
      %v943 = vrot.slane %v941, 5
      %v944 = vor.u32 %v940, %v943
      %v945 = vrot.slane %v944, 4
      %v947 = vshll.u32 %v868, 16
      %v949 = vrot.slane %v947, 5
      %v950 = vsel %vm297, %v945, %v949
      %v951 = vshrl.u32 %v868, 16
      %v953 = vrot.slane %v951, 4
      %v954 = vor.u32 %v953, %v949
      %v955 = vrot.slane %v954, 4
      %v957 = vshll.u32 %v898, 16
      %v959 = vrot.slane %v957, 5
      %v960 = vsel %vm297, %v955, %v959
      %v962 = vshrl.u32 %v869, 16
      %v964 = vrot.slane %v962, 4
      %v965 = vshll.u32 %v869, 16
      %v967 = vrot.slane %v965, 5
      %v968 = vor.u32 %v964, %v967
      %v969 = vrot.slane %v968, 4
      %v971 = vshll.u32 %v870, 16
      %v973 = vrot.slane %v971, 5
      %v974 = vsel %vm297, %v969, %v973
      %v975 = vshrl.u32 %v870, 16
      %v977 = vrot.slane %v975, 4
      %v978 = vor.u32 %v977, %v973
      %v979 = vrot.slane %v978, 4
      %v981 = vshll.u32 %v899, 16
      %v983 = vrot.slane %v981, 5
      %v984 = vsel %vm297, %v979, %v983
      %v986 = vshrl.u32 %v871, 16
      %v988 = vrot.slane %v986, 4
      %v989 = vshll.u32 %v871, 16
      %v991 = vrot.slane %v989, 5
      %v992 = vor.u32 %v988, %v991
      %v993 = vrot.slane %v992, 4
      %v995 = vshll.u32 %v872, 16
      %v997 = vrot.slane %v995, 5
      %v998 = vsel %vm297, %v993, %v997
      %v999 = vshrl.u32 %v872, 16
      %v1001 = vrot.slane %v999, 4
      %v1002 = vor.u32 %v1001, %v997
      %v1003 = vrot.slane %v1002, 4
      %v1005 = vshll.u32 %v900, 16
      %v1007 = vrot.slane %v1005, 5
      %v1008 = vsel %vm297, %v1003, %v1007
      %v1010 = vshrl.u32 %v873, 16
      %v1012 = vrot.slane %v1010, 4
      %v1013 = vshll.u32 %v873, 16
      %v1015 = vrot.slane %v1013, 5
      %v1016 = vor.u32 %v1012, %v1015
      %v1017 = vrot.slane %v1016, 4
      %v1019 = vshll.u32 %v874, 16
      %v1021 = vrot.slane %v1019, 5
      %v1022 = vsel %vm297, %v1017, %v1021
      %v1023 = vshrl.u32 %v874, 16
      %v1025 = vrot.slane %v1023, 4
      %v1026 = vor.u32 %v1025, %v1021
      %v1027 = vrot.slane %v1026, 4
      %v1029 = vshll.u32 %v901, 16
      %v1031 = vrot.slane %v1029, 5
      %v1032 = vsel %vm297, %v1027, %v1031
      %v1034 = vshrl.u32 %v875, 16
      %v1036 = vrot.slane %v1034, 4
      %v1037 = vshll.u32 %v875, 16
      %v1039 = vrot.slane %v1037, 5
      %v1040 = vor.u32 %v1036, %v1039
      %v1041 = vrot.slane %v1040, 4
      %v1043 = vshll.u32 %v876, 16
      %v1045 = vrot.slane %v1043, 5
      %v1046 = vsel %vm297, %v1041, %v1045
      %v1047 = vshrl.u32 %v876, 16
      %v1049 = vrot.slane %v1047, 4
      %v1050 = vor.u32 %v1049, %v1045
      %v1051 = vrot.slane %v1050, 4
      %v1053 = vshll.u32 %v902, 16
      %v1055 = vrot.slane %v1053, 5
      %v1056 = vsel %vm297, %v1051, %v1055
      %v1058 = vshrl.u32 %v877, 16
      %v1060 = vrot.slane %v1058, 4
      %v1061 = vshll.u32 %v877, 16
      %v1063 = vrot.slane %v1061, 5
      %v1064 = vor.u32 %v1060, %v1063
      %v1065 = vrot.slane %v1064, 4
      %v1067 = vshll.u32 %v878, 16
      %v1069 = vrot.slane %v1067, 5
      %v1070 = vsel %vm297, %v1065, %v1069
      %v1071 = vshrl.u32 %v878, 16
      %v1073 = vrot.slane %v1071, 4
      %v1074 = vor.u32 %v1073, %v1069
      %v1075 = vrot.slane %v1074, 4
      %v1077 = vshll.u32 %v903, 16
      %v1079 = vrot.slane %v1077, 5
      %v1080 = vsel %vm297, %v1075, %v1079
      %v1082 = vshrl.u32 %v879, 16
      %v1084 = vrot.slane %v1082, 4
      %v1085 = vshll.u32 %v879, 16
      %v1087 = vrot.slane %v1085, 5
      %v1088 = vor.u32 %v1084, %v1087
      %v1089 = vrot.slane %v1088, 4
      %v1091 = vshll.u32 %v880, 16
      %v1093 = vrot.slane %v1091, 5
      %v1094 = vsel %vm297, %v1089, %v1093
      %v1095 = vshrl.u32 %v880, 16
      %v1097 = vrot.slane %v1095, 4
      %v1098 = vor.u32 %v1097, %v1093
      %v1099 = vrot.slane %v1098, 4
      %v1101 = vshll.u32 %v904, 16
      %v1103 = vrot.slane %v1101, 5
      %v1104 = vsel %vm297, %v1099, %v1103
      %v1106 = vshrl.u32 %v881, 16
      %v1108 = vrot.slane %v1106, 4
      %v1109 = vshll.u32 %v881, 16
      %v1111 = vrot.slane %v1109, 5
      %v1112 = vor.u32 %v1108, %v1111
      %v1113 = vrot.slane %v1112, 4
      %v1115 = vshll.u32 %v882, 16
      %v1117 = vrot.slane %v1115, 5
      %v1118 = vsel %vm297, %v1113, %v1117
      %v1119 = vshrl.u32 %v882, 16
      %v1121 = vrot.slane %v1119, 4
      %v1122 = vor.u32 %v1121, %v1117
      %v1123 = vrot.slane %v1122, 4
      %v1125 = vshll.u32 %v905, 16
      %v1127 = vrot.slane %v1125, 5
      %v1128 = vsel %vm297, %v1123, %v1127
      %v1130 = vshrl.u32 %v883, 16
      %v1132 = vrot.slane %v1130, 4
      %v1133 = vshll.u32 %v883, 16
      %v1135 = vrot.slane %v1133, 5
      %v1136 = vor.u32 %v1132, %v1135
      %v1137 = vrot.slane %v1136, 4
      %v1139 = vshll.u32 %v884, 16
      %v1141 = vrot.slane %v1139, 5
      %v1142 = vsel %vm297, %v1137, %v1141
      %v1143 = vshrl.u32 %v884, 16
      %v1145 = vrot.slane %v1143, 4
      %v1146 = vor.u32 %v1145, %v1141
      %v1147 = vrot.slane %v1146, 4
      %v1149 = vshll.u32 %v906, 16
      %v1151 = vrot.slane %v1149, 5
      %v1152 = vsel %vm297, %v1147, %v1151
      %v1154 = vshrl.u32 %v885, 16
      %v1156 = vrot.slane %v1154, 4
      %v1157 = vshll.u32 %v885, 16
      %v1159 = vrot.slane %v1157, 5
      %v1160 = vor.u32 %v1156, %v1159
      %v1161 = vrot.slane %v1160, 4
      %v1163 = vshll.u32 %v886, 16
      %v1165 = vrot.slane %v1163, 5
      %v1166 = vsel %vm297, %v1161, %v1165
      %v1167 = vshrl.u32 %v886, 16
      %v1169 = vrot.slane %v1167, 4
      %v1170 = vor.u32 %v1169, %v1165
      %v1171 = vrot.slane %v1170, 4
      %v1173 = vshll.u32 %v907, 16
      %v1175 = vrot.slane %v1173, 5
      %v1176 = vsel %vm297, %v1171, %v1175
      %v1178 = vshrl.u32 %v887, 16
      %v1180 = vrot.slane %v1178, 4
      %v1181 = vshll.u32 %v887, 16
      %v1183 = vrot.slane %v1181, 5
      %v1184 = vor.u32 %v1180, %v1183
      %v1185 = vrot.slane %v1184, 4
      %v1187 = vshll.u32 %v888, 16
      %v1189 = vrot.slane %v1187, 5
      %v1190 = vsel %vm297, %v1185, %v1189
      %v1191 = vshrl.u32 %v888, 16
      %v1193 = vrot.slane %v1191, 4
      %v1194 = vor.u32 %v1193, %v1189
      %v1195 = vrot.slane %v1194, 4
      %v1197 = vshll.u32 %v908, 16
      %v1199 = vrot.slane %v1197, 5
      %v1200 = vsel %vm297, %v1195, %v1199
      %v1202 = vshrl.u32 %v889, 16
      %v1204 = vrot.slane %v1202, 4
      %v1205 = vshll.u32 %v889, 16
      %v1207 = vrot.slane %v1205, 5
      %v1208 = vor.u32 %v1204, %v1207
      %v1209 = vrot.slane %v1208, 4
      %v1211 = vshll.u32 %v890, 16
      %v1213 = vrot.slane %v1211, 5
      %v1214 = vsel %vm297, %v1209, %v1213
      %v1215 = vshrl.u32 %v890, 16
      %v1217 = vrot.slane %v1215, 4
      %v1218 = vor.u32 %v1217, %v1213
      %v1219 = vrot.slane %v1218, 4
      %v1221 = vshll.u32 %v909, 16
      %v1223 = vrot.slane %v1221, 5
      %v1224 = vsel %vm297, %v1219, %v1223
      %v1226 = vshrl.u32 %v891, 16
      %v1228 = vrot.slane %v1226, 4
      %v1229 = vshll.u32 %v891, 16
      %v1231 = vrot.slane %v1229, 5
      %v1232 = vor.u32 %v1228, %v1231
      %v1233 = vrot.slane %v1232, 4
      %v1235 = vshll.u32 %v892, 16
      %v1237 = vrot.slane %v1235, 5
      %v1238 = vsel %vm297, %v1233, %v1237
      %v1239 = vshrl.u32 %v892, 16
      %v1241 = vrot.slane %v1239, 4
      %v1242 = vor.u32 %v1241, %v1237
      %v1243 = vrot.slane %v1242, 4
      %v1245 = vshll.u32 %v910, 16
      %v1247 = vrot.slane %v1245, 5
      %v1248 = vsel %vm297, %v1243, %v1247
      %v1250 = vshrl.u32 %v893, 16
      %v1252 = vrot.slane %v1250, 4
      %v1253 = vshll.u32 %v893, 16
      %v1255 = vrot.slane %v1253, 5
      %v1256 = vor.u32 %v1252, %v1255
      %v1257 = vrot.slane %v1256, 4
      %v1259 = vshll.u32 %v894, 16
      %v1261 = vrot.slane %v1259, 5
      %v1262 = vsel %vm297, %v1257, %v1261
      %v1263 = vshrl.u32 %v894, 16
      %v1265 = vrot.slane %v1263, 4
      %v1266 = vor.u32 %v1265, %v1261
      %v1267 = vrot.slane %v1266, 4
      %v1269 = vshll.u32 %v911, 16
      %v1271 = vrot.slane %v1269, 5
      %v1272 = vsel %vm297, %v1267, %v1271
      %v1274 = vshrl.u32 %v895, 16
      %v1276 = vrot.slane %v1274, 4
      %v1277 = vshll.u32 %v895, 16
      %v1279 = vrot.slane %v1277, 5
      %v1280 = vor.u32 %v1276, %v1279
      %v1281 = vrot.slane %v1280, 4
      %v1283 = vshll.u32 %v896, 16
      %v1285 = vrot.slane %v1283, 5
      %v1286 = vsel %vm297, %v1281, %v1285
      %v1287 = vshrl.u32 %v896, 16
      %v1289 = vrot.slane %v1287, 4
      %v1290 = vor.u32 %v1289, %v1285
      %v1291 = vrot.slane %v1290, 4
      %v1293 = vshll.u32 %v912, 16
      %v1295 = vrot.slane %v1293, 5
      %v1296 = vsel %vm297, %v1291, %v1295
      %v1297 = vld [vmem:[%s864] sm:$0xe]
      %v1298 = vld [vmem:[%s864 + $0xc] sm:$0xe]
      %v1299 = vld [vmem:[%s864 + $0x18] sm:$0xe]
      %v1300 = vld [vmem:[%s864 + $0x24] sm:$0xe]
      %v1301 = vld [vmem:[%s864 + $0x30] sm:$0xe]
      %v1302 = vld [vmem:[%s864 + $0x3c] sm:$0xe]
      %v1303 = vld [vmem:[%s864 + $0x48] sm:$0xe]
      %v1304 = vld [vmem:[%s864 + $0x54] sm:$0xe]
      %v1305 = vld [vmem:[%s864 + $0x60] sm:$0xe]
      %v1306 = vld [vmem:[%s864 + $0x6c] sm:$0xe]
      %v1307 = vld [vmem:[%s864 + $0x78] sm:$0xe]
      %v1308 = vld [vmem:[%s864 + $0x84] sm:$0xe]
      %v1309 = vld [vmem:[%s864 + $0x90] sm:$0xe]
      %v1310 = vld [vmem:[%s864 + $0x9c] sm:$0xe]
      %v1311 = vld [vmem:[%s864 + $0xa8] sm:$0xe]
      %v1312 = vld [vmem:[%s864 + $0xb4] sm:$0xe]
      %v1361 = vrot.slane %v1297, 5
      %v1362 = vrot.slane %v1361, 4
      %v1363 = vrot.slane %v866, 5
      %v1364 = vsel %vm748, %v1362, %v1363
      %v1365 = vrot.slane %v1363, 4
      %v1366 = vrot.slane %v897, 5
      %v1367 = vsel %vm748, %v1365, %v1366
      %v1368 = vrot.slane %v1298, 5
      %v1369 = vrot.slane %v1368, 4
      %v1370 = vrot.slane %v868, 5
      %v1371 = vsel %vm748, %v1369, %v1370
      %v1372 = vrot.slane %v1370, 4
      %v1373 = vrot.slane %v898, 5
      %v1374 = vsel %vm748, %v1372, %v1373
      %v1375 = vrot.slane %v1299, 5
      %v1376 = vrot.slane %v1375, 4
      %v1377 = vrot.slane %v870, 5
      %v1378 = vsel %vm748, %v1376, %v1377
      %v1379 = vrot.slane %v1377, 4
      %v1380 = vrot.slane %v899, 5
      %v1381 = vsel %vm748, %v1379, %v1380
      %v1382 = vrot.slane %v1300, 5
      %v1383 = vrot.slane %v1382, 4
      %v1384 = vrot.slane %v872, 5
      %v1385 = vsel %vm748, %v1383, %v1384
      %v1386 = vrot.slane %v1384, 4
      %v1387 = vrot.slane %v900, 5
      %v1388 = vsel %vm748, %v1386, %v1387
      %v1389 = vrot.slane %v1301, 5
      %v1390 = vrot.slane %v1389, 4
      %v1391 = vrot.slane %v874, 5
      %v1392 = vsel %vm748, %v1390, %v1391
      %v1393 = vrot.slane %v1391, 4
      %v1394 = vrot.slane %v901, 5
      %v1395 = vsel %vm748, %v1393, %v1394
      %v1396 = vrot.slane %v1302, 5
      %v1397 = vrot.slane %v1396, 4
      %v1398 = vrot.slane %v876, 5
      %v1399 = vsel %vm748, %v1397, %v1398
      %v1400 = vrot.slane %v1398, 4
      %v1401 = vrot.slane %v902, 5
      %v1402 = vsel %vm748, %v1400, %v1401
      %v1403 = vrot.slane %v1303, 5
      %v1404 = vrot.slane %v1403, 4
      %v1405 = vrot.slane %v878, 5
      %v1406 = vsel %vm748, %v1404, %v1405
      %v1407 = vrot.slane %v1405, 4
      %v1408 = vrot.slane %v903, 5
      %v1409 = vsel %vm748, %v1407, %v1408
      %v1410 = vrot.slane %v1304, 5
      %v1411 = vrot.slane %v1410, 4
      %v1412 = vrot.slane %v880, 5
      %v1413 = vsel %vm748, %v1411, %v1412
      %v1414 = vrot.slane %v1412, 4
      %v1415 = vrot.slane %v904, 5
      %v1416 = vsel %vm748, %v1414, %v1415
      %v1417 = vrot.slane %v1305, 5
      %v1418 = vrot.slane %v1417, 4
      %v1419 = vrot.slane %v882, 5
      %v1420 = vsel %vm748, %v1418, %v1419
      %v1421 = vrot.slane %v1419, 4
      %v1422 = vrot.slane %v905, 5
      %v1423 = vsel %vm748, %v1421, %v1422
      %v1424 = vrot.slane %v1306, 5
      %v1425 = vrot.slane %v1424, 4
      %v1426 = vrot.slane %v884, 5
      %v1427 = vsel %vm748, %v1425, %v1426
      %v1428 = vrot.slane %v1426, 4
      %v1429 = vrot.slane %v906, 5
      %v1430 = vsel %vm748, %v1428, %v1429
      %v1431 = vrot.slane %v1307, 5
      %v1432 = vrot.slane %v1431, 4
      %v1433 = vrot.slane %v886, 5
      %v1434 = vsel %vm748, %v1432, %v1433
      %v1435 = vrot.slane %v1433, 4
      %v1436 = vrot.slane %v907, 5
      %v1437 = vsel %vm748, %v1435, %v1436
      %v1438 = vrot.slane %v1308, 5
      %v1439 = vrot.slane %v1438, 4
      %v1440 = vrot.slane %v888, 5
      %v1441 = vsel %vm748, %v1439, %v1440
      %v1442 = vrot.slane %v1440, 4
      %v1443 = vrot.slane %v908, 5
      %v1444 = vsel %vm748, %v1442, %v1443
      %v1445 = vrot.slane %v1309, 5
      %v1446 = vrot.slane %v1445, 4
      %v1447 = vrot.slane %v890, 5
      %v1448 = vsel %vm748, %v1446, %v1447
      %v1449 = vrot.slane %v1447, 4
      %v1450 = vrot.slane %v909, 5
      %v1451 = vsel %vm748, %v1449, %v1450
      %v1452 = vrot.slane %v1310, 5
      %v1453 = vrot.slane %v1452, 4
      %v1454 = vrot.slane %v892, 5
      %v1455 = vsel %vm748, %v1453, %v1454
      %v1456 = vrot.slane %v1454, 4
      %v1457 = vrot.slane %v910, 5
      %v1458 = vsel %vm748, %v1456, %v1457
      %v1459 = vrot.slane %v1311, 5
      %v1460 = vrot.slane %v1459, 4
      %v1461 = vrot.slane %v894, 5
      %v1462 = vsel %vm748, %v1460, %v1461
      %v1463 = vrot.slane %v1461, 4
      %v1464 = vrot.slane %v911, 5
      %v1465 = vsel %vm748, %v1463, %v1464
      %v1466 = vrot.slane %v1312, 5
      %v1467 = vrot.slane %v1466, 4
      %v1468 = vrot.slane %v896, 5
      %v1469 = vsel %vm748, %v1467, %v1468
      %v1470 = vrot.slane %v1468, 4
      %v1471 = vrot.slane %v912, 5
      %v1472 = vsel %vm748, %v1470, %v1471
      %s1473 = sadd.s32 %s243, 2
      %s1474 = smul.u32 %s1473, 3
      %s1475 = smul.addr %s1474, 4
      %s1476 = scalar_lea.vmem %s220, %s1475
      %v1477 = vld [vmem:[%s1476] sm:$0xf]
      %v1478 = vld [vmem:[%s1476 + $0x4] sm:$0xf]
      %v1479 = vld [vmem:[%s1476 + $0xc] sm:$0xf]
      %v1480 = vld [vmem:[%s1476 + $0x10] sm:$0xf]
      %v1481 = vld [vmem:[%s1476 + $0x18] sm:$0xf]
      %v1482 = vld [vmem:[%s1476 + $0x1c] sm:$0xf]
      %v1483 = vld [vmem:[%s1476 + $0x24] sm:$0xf]
      %v1484 = vld [vmem:[%s1476 + $0x28] sm:$0xf]
      %v1485 = vld [vmem:[%s1476 + $0x30] sm:$0xf]
      %v1486 = vld [vmem:[%s1476 + $0x34] sm:$0xf]
      %v1487 = vld [vmem:[%s1476 + $0x3c] sm:$0xf]
      %v1488 = vld [vmem:[%s1476 + $0x40] sm:$0xf]
      %v1489 = vld [vmem:[%s1476 + $0x48] sm:$0xf]
      %v1490 = vld [vmem:[%s1476 + $0x4c] sm:$0xf]
      %v1491 = vld [vmem:[%s1476 + $0x54] sm:$0xf]
      %v1492 = vld [vmem:[%s1476 + $0x58] sm:$0xf]
      %v1493 = vld [vmem:[%s1476 + $0x60] sm:$0xf]
      %v1494 = vld [vmem:[%s1476 + $0x64] sm:$0xf]
      %v1495 = vld [vmem:[%s1476 + $0x6c] sm:$0xf]
      %v1496 = vld [vmem:[%s1476 + $0x70] sm:$0xf]
      %v1497 = vld [vmem:[%s1476 + $0x78] sm:$0xf]
      %v1498 = vld [vmem:[%s1476 + $0x7c] sm:$0xf]
      %v1499 = vld [vmem:[%s1476 + $0x84] sm:$0xf]
      %v1500 = vld [vmem:[%s1476 + $0x88] sm:$0xf]
      %v1501 = vld [vmem:[%s1476 + $0x90] sm:$0xf]
      %v1502 = vld [vmem:[%s1476 + $0x94] sm:$0xf]
      %v1503 = vld [vmem:[%s1476 + $0x9c] sm:$0xf]
      %v1504 = vld [vmem:[%s1476 + $0xa0] sm:$0xf]
      %v1505 = vld [vmem:[%s1476 + $0xa8] sm:$0xf]
      %v1506 = vld [vmem:[%s1476 + $0xac] sm:$0xf]
      %v1507 = vld [vmem:[%s1476 + $0xb4] sm:$0xf]
      %v1508 = vld [vmem:[%s1476 + $0xb8] sm:$0xf]
      %v1509 = vld [vmem:[%s1476 + $0x8] sm:$0x1]
      %v1510 = vld [vmem:[%s1476 + $0x14] sm:$0x1]
      %v1511 = vld [vmem:[%s1476 + $0x20] sm:$0x1]
      %v1512 = vld [vmem:[%s1476 + $0x2c] sm:$0x1]
      %v1513 = vld [vmem:[%s1476 + $0x38] sm:$0x1]
      %v1514 = vld [vmem:[%s1476 + $0x44] sm:$0x1]
      %v1515 = vld [vmem:[%s1476 + $0x50] sm:$0x1]
      %v1516 = vld [vmem:[%s1476 + $0x5c] sm:$0x1]
      %v1517 = vld [vmem:[%s1476 + $0x68] sm:$0x1]
      %v1518 = vld [vmem:[%s1476 + $0x74] sm:$0x1]
      %v1519 = vld [vmem:[%s1476 + $0x80] sm:$0x1]
      %v1520 = vld [vmem:[%s1476 + $0x8c] sm:$0x1]
      %v1521 = vld [vmem:[%s1476 + $0x98] sm:$0x1]
      %v1522 = vld [vmem:[%s1476 + $0xa4] sm:$0x1]
      %v1523 = vld [vmem:[%s1476 + $0xb0] sm:$0x1]
      %v1524 = vld [vmem:[%s1476 + $0xbc] sm:$0x1]
      %v1526 = vshrl.u32 %v1477, 16
      %v1528 = vrot.slane %v1526, 4
      %v1529 = vshll.u32 %v1477, 16
      %v1531 = vrot.slane %v1529, 5
      %v1532 = vor.u32 %v1528, %v1531
      %v1533 = vrot.slane %v1532, 4
      %v1535 = vshll.u32 %v1478, 16
      %v1537 = vrot.slane %v1535, 5
      %v1538 = vsel %vm297, %v1533, %v1537
      %v1539 = vshrl.u32 %v1478, 16
      %v1541 = vrot.slane %v1539, 4
      %v1542 = vor.u32 %v1541, %v1537
      %v1543 = vrot.slane %v1542, 4
      %v1545 = vshll.u32 %v1509, 16
      %v1547 = vrot.slane %v1545, 5
      %v1548 = vsel %vm297, %v1543, %v1547
      %v1550 = vshrl.u32 %v1479, 16
      %v1552 = vrot.slane %v1550, 4
      %v1553 = vshll.u32 %v1479, 16
      %v1555 = vrot.slane %v1553, 5
      %v1556 = vor.u32 %v1552, %v1555
      %v1557 = vrot.slane %v1556, 4
      %v1559 = vshll.u32 %v1480, 16
      %v1561 = vrot.slane %v1559, 5
      %v1562 = vsel %vm297, %v1557, %v1561
      %v1563 = vshrl.u32 %v1480, 16
      %v1565 = vrot.slane %v1563, 4
      %v1566 = vor.u32 %v1565, %v1561
      %v1567 = vrot.slane %v1566, 4
      %v1569 = vshll.u32 %v1510, 16
      %v1571 = vrot.slane %v1569, 5
      %v1572 = vsel %vm297, %v1567, %v1571
      %v1574 = vshrl.u32 %v1481, 16
      %v1576 = vrot.slane %v1574, 4
      %v1577 = vshll.u32 %v1481, 16
      %v1579 = vrot.slane %v1577, 5
      %v1580 = vor.u32 %v1576, %v1579
      %v1581 = vrot.slane %v1580, 4
      %v1583 = vshll.u32 %v1482, 16
      %v1585 = vrot.slane %v1583, 5
      %v1586 = vsel %vm297, %v1581, %v1585
      %v1587 = vshrl.u32 %v1482, 16
      %v1589 = vrot.slane %v1587, 4
      %v1590 = vor.u32 %v1589, %v1585
      %v1591 = vrot.slane %v1590, 4
      %v1593 = vshll.u32 %v1511, 16
      %v1595 = vrot.slane %v1593, 5
      %v1596 = vsel %vm297, %v1591, %v1595
      %v1598 = vshrl.u32 %v1483, 16
      %v1600 = vrot.slane %v1598, 4
      %v1601 = vshll.u32 %v1483, 16
      %v1603 = vrot.slane %v1601, 5
      %v1604 = vor.u32 %v1600, %v1603
      %v1605 = vrot.slane %v1604, 4
      %v1607 = vshll.u32 %v1484, 16
      %v1609 = vrot.slane %v1607, 5
      %v1610 = vsel %vm297, %v1605, %v1609
      %v1611 = vshrl.u32 %v1484, 16
      %v1613 = vrot.slane %v1611, 4
      %v1614 = vor.u32 %v1613, %v1609
      %v1615 = vrot.slane %v1614, 4
      %v1617 = vshll.u32 %v1512, 16
      %v1619 = vrot.slane %v1617, 5
      %v1620 = vsel %vm297, %v1615, %v1619
      %v1622 = vshrl.u32 %v1485, 16
      %v1624 = vrot.slane %v1622, 4
      %v1625 = vshll.u32 %v1485, 16
      %v1627 = vrot.slane %v1625, 5
      %v1628 = vor.u32 %v1624, %v1627
      %v1629 = vrot.slane %v1628, 4
      %v1631 = vshll.u32 %v1486, 16
      %v1633 = vrot.slane %v1631, 5
      %v1634 = vsel %vm297, %v1629, %v1633
      %v1635 = vshrl.u32 %v1486, 16
      %v1637 = vrot.slane %v1635, 4
      %v1638 = vor.u32 %v1637, %v1633
      %v1639 = vrot.slane %v1638, 4
      %v1641 = vshll.u32 %v1513, 16
      %v1643 = vrot.slane %v1641, 5
      %v1644 = vsel %vm297, %v1639, %v1643
      %v1646 = vshrl.u32 %v1487, 16
      %v1648 = vrot.slane %v1646, 4
      %v1649 = vshll.u32 %v1487, 16
      %v1651 = vrot.slane %v1649, 5
      %v1652 = vor.u32 %v1648, %v1651
      %v1653 = vrot.slane %v1652, 4
      %v1655 = vshll.u32 %v1488, 16
      %v1657 = vrot.slane %v1655, 5
      %v1658 = vsel %vm297, %v1653, %v1657
      %v1659 = vshrl.u32 %v1488, 16
      %v1661 = vrot.slane %v1659, 4
      %v1662 = vor.u32 %v1661, %v1657
      %v1663 = vrot.slane %v1662, 4
      %v1665 = vshll.u32 %v1514, 16
      %v1667 = vrot.slane %v1665, 5
      %v1668 = vsel %vm297, %v1663, %v1667
      %v1670 = vshrl.u32 %v1489, 16
      %v1672 = vrot.slane %v1670, 4
      %v1673 = vshll.u32 %v1489, 16
      %v1675 = vrot.slane %v1673, 5
      %v1676 = vor.u32 %v1672, %v1675
      %v1677 = vrot.slane %v1676, 4
      %v1679 = vshll.u32 %v1490, 16
      %v1681 = vrot.slane %v1679, 5
      %v1682 = vsel %vm297, %v1677, %v1681
      %v1683 = vshrl.u32 %v1490, 16
      %v1685 = vrot.slane %v1683, 4
      %v1686 = vor.u32 %v1685, %v1681
      %v1687 = vrot.slane %v1686, 4
      %v1689 = vshll.u32 %v1515, 16
      %v1691 = vrot.slane %v1689, 5
      %v1692 = vsel %vm297, %v1687, %v1691
      %v1694 = vshrl.u32 %v1491, 16
      %v1696 = vrot.slane %v1694, 4
      %v1697 = vshll.u32 %v1491, 16
      %v1699 = vrot.slane %v1697, 5
      %v1700 = vor.u32 %v1696, %v1699
      %v1701 = vrot.slane %v1700, 4
      %v1703 = vshll.u32 %v1492, 16
      %v1705 = vrot.slane %v1703, 5
      %v1706 = vsel %vm297, %v1701, %v1705
      %v1707 = vshrl.u32 %v1492, 16
      %v1709 = vrot.slane %v1707, 4
      %v1710 = vor.u32 %v1709, %v1705
      %v1711 = vrot.slane %v1710, 4
      %v1713 = vshll.u32 %v1516, 16
      %v1715 = vrot.slane %v1713, 5
      %v1716 = vsel %vm297, %v1711, %v1715
      %v1718 = vshrl.u32 %v1493, 16
      %v1720 = vrot.slane %v1718, 4
      %v1721 = vshll.u32 %v1493, 16
      %v1723 = vrot.slane %v1721, 5
      %v1724 = vor.u32 %v1720, %v1723
      %v1725 = vrot.slane %v1724, 4
      %v1727 = vshll.u32 %v1494, 16
      %v1729 = vrot.slane %v1727, 5
      %v1730 = vsel %vm297, %v1725, %v1729
      %v1731 = vshrl.u32 %v1494, 16
      %v1733 = vrot.slane %v1731, 4
      %v1734 = vor.u32 %v1733, %v1729
      %v1735 = vrot.slane %v1734, 4
      %v1737 = vshll.u32 %v1517, 16
      %v1739 = vrot.slane %v1737, 5
      %v1740 = vsel %vm297, %v1735, %v1739
      %v1742 = vshrl.u32 %v1495, 16
      %v1744 = vrot.slane %v1742, 4
      %v1745 = vshll.u32 %v1495, 16
      %v1747 = vrot.slane %v1745, 5
      %v1748 = vor.u32 %v1744, %v1747
      %v1749 = vrot.slane %v1748, 4
      %v1751 = vshll.u32 %v1496, 16
      %v1753 = vrot.slane %v1751, 5
      %v1754 = vsel %vm297, %v1749, %v1753
      %v1755 = vshrl.u32 %v1496, 16
      %v1757 = vrot.slane %v1755, 4
      %v1758 = vor.u32 %v1757, %v1753
      %v1759 = vrot.slane %v1758, 4
      %v1761 = vshll.u32 %v1518, 16
      %v1763 = vrot.slane %v1761, 5
      %v1764 = vsel %vm297, %v1759, %v1763
      %v1766 = vshrl.u32 %v1497, 16
      %v1768 = vrot.slane %v1766, 4
      %v1769 = vshll.u32 %v1497, 16
      %v1771 = vrot.slane %v1769, 5
      %v1772 = vor.u32 %v1768, %v1771
      %v1773 = vrot.slane %v1772, 4
      %v1775 = vshll.u32 %v1498, 16
      %v1777 = vrot.slane %v1775, 5
      %v1778 = vsel %vm297, %v1773, %v1777
      %v1779 = vshrl.u32 %v1498, 16
      %v1781 = vrot.slane %v1779, 4
      %v1782 = vor.u32 %v1781, %v1777
      %v1783 = vrot.slane %v1782, 4
      %v1785 = vshll.u32 %v1519, 16
      %v1787 = vrot.slane %v1785, 5
      %v1788 = vsel %vm297, %v1783, %v1787
      %v1790 = vshrl.u32 %v1499, 16
      %v1792 = vrot.slane %v1790, 4
      %v1793 = vshll.u32 %v1499, 16
      %v1795 = vrot.slane %v1793, 5
      %v1796 = vor.u32 %v1792, %v1795
      %v1797 = vrot.slane %v1796, 4
      %v1799 = vshll.u32 %v1500, 16
      %v1801 = vrot.slane %v1799, 5
      %v1802 = vsel %vm297, %v1797, %v1801
      %v1803 = vshrl.u32 %v1500, 16
      %v1805 = vrot.slane %v1803, 4
      %v1806 = vor.u32 %v1805, %v1801
      %v1807 = vrot.slane %v1806, 4
      %v1809 = vshll.u32 %v1520, 16
      %v1811 = vrot.slane %v1809, 5
      %v1812 = vsel %vm297, %v1807, %v1811
      %v1814 = vshrl.u32 %v1501, 16
      %v1816 = vrot.slane %v1814, 4
      %v1817 = vshll.u32 %v1501, 16
      %v1819 = vrot.slane %v1817, 5
      %v1820 = vor.u32 %v1816, %v1819
      %v1821 = vrot.slane %v1820, 4
      %v1823 = vshll.u32 %v1502, 16
      %v1825 = vrot.slane %v1823, 5
      %v1826 = vsel %vm297, %v1821, %v1825
      %v1827 = vshrl.u32 %v1502, 16
      %v1829 = vrot.slane %v1827, 4
      %v1830 = vor.u32 %v1829, %v1825
      %v1831 = vrot.slane %v1830, 4
      %v1833 = vshll.u32 %v1521, 16
      %v1835 = vrot.slane %v1833, 5
      %v1836 = vsel %vm297, %v1831, %v1835
      %v1838 = vshrl.u32 %v1503, 16
      %v1840 = vrot.slane %v1838, 4
      %v1841 = vshll.u32 %v1503, 16
      %v1843 = vrot.slane %v1841, 5
      %v1844 = vor.u32 %v1840, %v1843
      %v1845 = vrot.slane %v1844, 4
      %v1847 = vshll.u32 %v1504, 16
      %v1849 = vrot.slane %v1847, 5
      %v1850 = vsel %vm297, %v1845, %v1849
      %v1851 = vshrl.u32 %v1504, 16
      %v1853 = vrot.slane %v1851, 4
      %v1854 = vor.u32 %v1853, %v1849
      %v1855 = vrot.slane %v1854, 4
      %v1857 = vshll.u32 %v1522, 16
      %v1859 = vrot.slane %v1857, 5
      %v1860 = vsel %vm297, %v1855, %v1859
      %v1862 = vshrl.u32 %v1505, 16
      %v1864 = vrot.slane %v1862, 4
      %v1865 = vshll.u32 %v1505, 16
      %v1867 = vrot.slane %v1865, 5
      %v1868 = vor.u32 %v1864, %v1867
      %v1869 = vrot.slane %v1868, 4
      %v1871 = vshll.u32 %v1506, 16
      %v1873 = vrot.slane %v1871, 5
      %v1874 = vsel %vm297, %v1869, %v1873
      %v1875 = vshrl.u32 %v1506, 16
      %v1877 = vrot.slane %v1875, 4
      %v1878 = vor.u32 %v1877, %v1873
      %v1879 = vrot.slane %v1878, 4
      %v1881 = vshll.u32 %v1523, 16
      %v1883 = vrot.slane %v1881, 5
      %v1884 = vsel %vm297, %v1879, %v1883
      %v1886 = vshrl.u32 %v1507, 16
      %v1888 = vrot.slane %v1886, 4
      %v1889 = vshll.u32 %v1507, 16
      %v1891 = vrot.slane %v1889, 5
      %v1892 = vor.u32 %v1888, %v1891
      %v1893 = vrot.slane %v1892, 4
      %v1895 = vshll.u32 %v1508, 16
      %v1897 = vrot.slane %v1895, 5
      %v1898 = vsel %vm297, %v1893, %v1897
      %v1899 = vshrl.u32 %v1508, 16
      %v1901 = vrot.slane %v1899, 4
      %v1902 = vor.u32 %v1901, %v1897
      %v1903 = vrot.slane %v1902, 4
      %v1905 = vshll.u32 %v1524, 16
      %v1907 = vrot.slane %v1905, 5
      %v1908 = vsel %vm297, %v1903, %v1907
      %v1909 = vld [vmem:[%s1476] sm:$0xe]
      %v1910 = vld [vmem:[%s1476 + $0xc] sm:$0xe]
      %v1911 = vld [vmem:[%s1476 + $0x18] sm:$0xe]
      %v1912 = vld [vmem:[%s1476 + $0x24] sm:$0xe]
      %v1913 = vld [vmem:[%s1476 + $0x30] sm:$0xe]
      %v1914 = vld [vmem:[%s1476 + $0x3c] sm:$0xe]
      %v1915 = vld [vmem:[%s1476 + $0x48] sm:$0xe]
      %v1916 = vld [vmem:[%s1476 + $0x54] sm:$0xe]
      %v1917 = vld [vmem:[%s1476 + $0x60] sm:$0xe]
      %v1918 = vld [vmem:[%s1476 + $0x6c] sm:$0xe]
      %v1919 = vld [vmem:[%s1476 + $0x78] sm:$0xe]
      %v1920 = vld [vmem:[%s1476 + $0x84] sm:$0xe]
      %v1921 = vld [vmem:[%s1476 + $0x90] sm:$0xe]
      %v1922 = vld [vmem:[%s1476 + $0x9c] sm:$0xe]
      %v1923 = vld [vmem:[%s1476 + $0xa8] sm:$0xe]
      %v1924 = vld [vmem:[%s1476 + $0xb4] sm:$0xe]
      %v1973 = vrot.slane %v1909, 5
      %v1974 = vrot.slane %v1973, 4
      %v1975 = vrot.slane %v1478, 5
      %v1976 = vsel %vm748, %v1974, %v1975
      %v1977 = vrot.slane %v1975, 4
      %v1978 = vrot.slane %v1509, 5
      %v1979 = vsel %vm748, %v1977, %v1978
      %v1980 = vrot.slane %v1910, 5
      %v1981 = vrot.slane %v1980, 4
      %v1982 = vrot.slane %v1480, 5
      %v1983 = vsel %vm748, %v1981, %v1982
      %v1984 = vrot.slane %v1982, 4
      %v1985 = vrot.slane %v1510, 5
      %v1986 = vsel %vm748, %v1984, %v1985
      %v1987 = vrot.slane %v1911, 5
      %v1988 = vrot.slane %v1987, 4
      %v1989 = vrot.slane %v1482, 5
      %v1990 = vsel %vm748, %v1988, %v1989
      %v1991 = vrot.slane %v1989, 4
      %v1992 = vrot.slane %v1511, 5
      %v1993 = vsel %vm748, %v1991, %v1992
      %v1994 = vrot.slane %v1912, 5
      %v1995 = vrot.slane %v1994, 4
      %v1996 = vrot.slane %v1484, 5
      %v1997 = vsel %vm748, %v1995, %v1996
      %v1998 = vrot.slane %v1996, 4
      %v1999 = vrot.slane %v1512, 5
      %v2000 = vsel %vm748, %v1998, %v1999
      %v2001 = vrot.slane %v1913, 5
      %v2002 = vrot.slane %v2001, 4
      %v2003 = vrot.slane %v1486, 5
      %v2004 = vsel %vm748, %v2002, %v2003
      %v2005 = vrot.slane %v2003, 4
      %v2006 = vrot.slane %v1513, 5
      %v2007 = vsel %vm748, %v2005, %v2006
      %v2008 = vrot.slane %v1914, 5
      %v2009 = vrot.slane %v2008, 4
      %v2010 = vrot.slane %v1488, 5
      %v2011 = vsel %vm748, %v2009, %v2010
      %v2012 = vrot.slane %v2010, 4
      %v2013 = vrot.slane %v1514, 5
      %v2014 = vsel %vm748, %v2012, %v2013
      %v2015 = vrot.slane %v1915, 5
      %v2016 = vrot.slane %v2015, 4
      %v2017 = vrot.slane %v1490, 5
      %v2018 = vsel %vm748, %v2016, %v2017
      %v2019 = vrot.slane %v2017, 4
      %v2020 = vrot.slane %v1515, 5
      %v2021 = vsel %vm748, %v2019, %v2020
      %v2022 = vrot.slane %v1916, 5
      %v2023 = vrot.slane %v2022, 4
      %v2024 = vrot.slane %v1492, 5
      %v2025 = vsel %vm748, %v2023, %v2024
      %v2026 = vrot.slane %v2024, 4
      %v2027 = vrot.slane %v1516, 5
      %v2028 = vsel %vm748, %v2026, %v2027
      %v2029 = vrot.slane %v1917, 5
      %v2030 = vrot.slane %v2029, 4
      %v2031 = vrot.slane %v1494, 5
      %v2032 = vsel %vm748, %v2030, %v2031
      %v2033 = vrot.slane %v2031, 4
      %v2034 = vrot.slane %v1517, 5
      %v2035 = vsel %vm748, %v2033, %v2034
      %v2036 = vrot.slane %v1918, 5
      %v2037 = vrot.slane %v2036, 4
      %v2038 = vrot.slane %v1496, 5
      %v2039 = vsel %vm748, %v2037, %v2038
      %v2040 = vrot.slane %v2038, 4
      %v2041 = vrot.slane %v1518, 5
      %v2042 = vsel %vm748, %v2040, %v2041
      %v2043 = vrot.slane %v1919, 5
      %v2044 = vrot.slane %v2043, 4
      %v2045 = vrot.slane %v1498, 5
      %v2046 = vsel %vm748, %v2044, %v2045
      %v2047 = vrot.slane %v2045, 4
      %v2048 = vrot.slane %v1519, 5
      %v2049 = vsel %vm748, %v2047, %v2048
      %v2050 = vrot.slane %v1920, 5
      %v2051 = vrot.slane %v2050, 4
      %v2052 = vrot.slane %v1500, 5
      %v2053 = vsel %vm748, %v2051, %v2052
      %v2054 = vrot.slane %v2052, 4
      %v2055 = vrot.slane %v1520, 5
      %v2056 = vsel %vm748, %v2054, %v2055
      %v2057 = vrot.slane %v1921, 5
      %v2058 = vrot.slane %v2057, 4
      %v2059 = vrot.slane %v1502, 5
      %v2060 = vsel %vm748, %v2058, %v2059
      %v2061 = vrot.slane %v2059, 4
      %v2062 = vrot.slane %v1521, 5
      %v2063 = vsel %vm748, %v2061, %v2062
      %v2064 = vrot.slane %v1922, 5
      %v2065 = vrot.slane %v2064, 4
      %v2066 = vrot.slane %v1504, 5
      %v2067 = vsel %vm748, %v2065, %v2066
      %v2068 = vrot.slane %v2066, 4
      %v2069 = vrot.slane %v1522, 5
      %v2070 = vsel %vm748, %v2068, %v2069
      %v2071 = vrot.slane %v1923, 5
      %v2072 = vrot.slane %v2071, 4
      %v2073 = vrot.slane %v1506, 5
      %v2074 = vsel %vm748, %v2072, %v2073
      %v2075 = vrot.slane %v2073, 4
      %v2076 = vrot.slane %v1523, 5
      %v2077 = vsel %vm748, %v2075, %v2076
      %v2078 = vrot.slane %v1924, 5
      %v2079 = vrot.slane %v2078, 4
      %v2080 = vrot.slane %v1508, 5
      %v2081 = vsel %vm748, %v2079, %v2080
      %v2082 = vrot.slane %v2080, 4
      %v2083 = vrot.slane %v1524, 5
      %v2084 = vsel %vm748, %v2082, %v2083
      %v2101 = vunpack.c.l.b16 %v247
      %v2102 = vunpack.c.l.b16 %v248
      %v2103 = vunpack.c.l.b16 %v249
      %v2104 = vunpack.c.l.b16 %v250
      %v2105 = vunpack.c.l.b16 %v251
      %v2106 = vunpack.c.l.b16 %v252
      %v2107 = vunpack.c.l.b16 %v253
      %v2108 = vunpack.c.l.b16 %v254
      %v2109 = vunpack.c.l.b16 %v255
      %v2110 = vunpack.c.l.b16 %v256
      %v2111 = vunpack.c.l.b16 %v257
      %v2112 = vunpack.c.l.b16 %v258
      %v2113 = vunpack.c.l.b16 %v259
      %v2114 = vunpack.c.l.b16 %v260
      %v2115 = vunpack.c.l.b16 %v261
      %v2116 = vunpack.c.l.b16 %v262
      %v2117 = vunpack.c.l.b16 %v263
      %v2118 = vunpack.c.l.b16 %v264
      %v2119 = vunpack.c.l.b16 %v265
      %v2120 = vunpack.c.l.b16 %v266
      %v2121 = vunpack.c.l.b16 %v267
      %v2122 = vunpack.c.l.b16 %v268
      %v2123 = vunpack.c.l.b16 %v269
      %v2124 = vunpack.c.l.b16 %v270
      %v2125 = vunpack.c.l.b16 %v271
      %v2126 = vunpack.c.l.b16 %v272
      %v2127 = vunpack.c.l.b16 %v273
      %v2128 = vunpack.c.l.b16 %v274
      %v2129 = vunpack.c.l.b16 %v275
      %v2130 = vunpack.c.l.b16 %v276
      %v2131 = vunpack.c.l.b16 %v277
      %v2132 = vunpack.c.l.b16 %v278
      %v2133 = vpack.c.b16 %v2102, %v2101
      %v2134 = vpack.c.b16 %v2104, %v2103
      %v2135 = vpack.c.b16 %v2106, %v2105
      %v2136 = vpack.c.b16 %v2108, %v2107
      %v2137 = vpack.c.b16 %v2110, %v2109
      %v2138 = vpack.c.b16 %v2112, %v2111
      %v2139 = vpack.c.b16 %v2114, %v2113
      %v2140 = vpack.c.b16 %v2116, %v2115
      %v2141 = vpack.c.b16 %v2118, %v2117
      %v2142 = vpack.c.b16 %v2120, %v2119
      %v2143 = vpack.c.b16 %v2122, %v2121
      %v2144 = vpack.c.b16 %v2124, %v2123
      %v2145 = vpack.c.b16 %v2126, %v2125
      %v2146 = vpack.c.b16 %v2128, %v2127
      %v2147 = vpack.c.b16 %v2130, %v2129
      %v2148 = vpack.c.b16 %v2132, %v2131
      %v2149 = vunpack.c.l.b16 %v311
      %v2150 = vunpack.c.l.b16 %v321
      %v2151 = vunpack.c.l.b16 %v335
      %v2152 = vunpack.c.l.b16 %v345
      %v2153 = vunpack.c.l.b16 %v359
      %v2154 = vunpack.c.l.b16 %v369
      %v2155 = vunpack.c.l.b16 %v383
      %v2156 = vunpack.c.l.b16 %v393
      %v2157 = vunpack.c.l.b16 %v407
      %v2158 = vunpack.c.l.b16 %v417
      %v2159 = vunpack.c.l.b16 %v431
      %v2160 = vunpack.c.l.b16 %v441
      %v2161 = vunpack.c.l.b16 %v455
      %v2162 = vunpack.c.l.b16 %v465
      %v2163 = vunpack.c.l.b16 %v479
      %v2164 = vunpack.c.l.b16 %v489
      %v2165 = vunpack.c.l.b16 %v503
      %v2166 = vunpack.c.l.b16 %v513
      %v2167 = vunpack.c.l.b16 %v527
      %v2168 = vunpack.c.l.b16 %v537
      %v2169 = vunpack.c.l.b16 %v551
      %v2170 = vunpack.c.l.b16 %v561
      %v2171 = vunpack.c.l.b16 %v575
      %v2172 = vunpack.c.l.b16 %v585
      %v2173 = vunpack.c.l.b16 %v599
      %v2174 = vunpack.c.l.b16 %v609
      %v2175 = vunpack.c.l.b16 %v623
      %v2176 = vunpack.c.l.b16 %v633
      %v2177 = vunpack.c.l.b16 %v647
      %v2178 = vunpack.c.l.b16 %v657
      %v2179 = vunpack.c.l.b16 %v671
      %v2180 = vunpack.c.l.b16 %v681
      %v2181 = vpack.c.b16 %v2150, %v2149
      %v2182 = vpack.c.b16 %v2152, %v2151
      %v2183 = vpack.c.b16 %v2154, %v2153
      %v2184 = vpack.c.b16 %v2156, %v2155
      %v2185 = vpack.c.b16 %v2158, %v2157
      %v2186 = vpack.c.b16 %v2160, %v2159
      %v2187 = vpack.c.b16 %v2162, %v2161
      %v2188 = vpack.c.b16 %v2164, %v2163
      %v2189 = vpack.c.b16 %v2166, %v2165
      %v2190 = vpack.c.b16 %v2168, %v2167
      %v2191 = vpack.c.b16 %v2170, %v2169
      %v2192 = vpack.c.b16 %v2172, %v2171
      %v2193 = vpack.c.b16 %v2174, %v2173
      %v2194 = vpack.c.b16 %v2176, %v2175
      %v2195 = vpack.c.b16 %v2178, %v2177
      %v2196 = vpack.c.b16 %v2180, %v2179
      %2197 = vrot.lane.b32.xlu0 %v2181, 4
      %v2198 = vpop.permute.xlu0 %2197
      %2199 = vrot.lane.b32.xlu0 %v2182, 4
      %v2200 = vpop.permute.xlu0 %2199
      %2201 = vrot.lane.b32.xlu0 %v2183, 4
      %v2202 = vpop.permute.xlu0 %2201
      %2203 = vrot.lane.b32.xlu0 %v2184, 4
      %v2204 = vpop.permute.xlu0 %2203
      %2205 = vrot.lane.b32.xlu0 %v2185, 4
      %v2206 = vpop.permute.xlu0 %2205
      %2207 = vrot.lane.b32.xlu0 %v2186, 4
      %v2208 = vpop.permute.xlu0 %2207
      %2209 = vrot.lane.b32.xlu0 %v2187, 4
      %v2210 = vpop.permute.xlu0 %2209
      %2211 = vrot.lane.b32.xlu0 %v2188, 4
      %v2212 = vpop.permute.xlu0 %2211
      %2213 = vrot.lane.b32.xlu0 %v2189, 4
      %v2214 = vpop.permute.xlu0 %2213
      %2215 = vrot.lane.b32.xlu0 %v2190, 4
      %v2216 = vpop.permute.xlu0 %2215
      %2217 = vrot.lane.b32.xlu0 %v2191, 4
      %v2218 = vpop.permute.xlu0 %2217
      %2219 = vrot.lane.b32.xlu0 %v2192, 4
      %v2220 = vpop.permute.xlu0 %2219
      %2221 = vrot.lane.b32.xlu0 %v2193, 4
      %v2222 = vpop.permute.xlu0 %2221
      %2223 = vrot.lane.b32.xlu0 %v2194, 4
      %v2224 = vpop.permute.xlu0 %2223
      %2225 = vrot.lane.b32.xlu0 %v2195, 4
      %v2226 = vpop.permute.xlu0 %2225
      %2227 = vrot.lane.b32.xlu0 %v2196, 4
      %v2228 = vpop.permute.xlu0 %2227
      %v2229 = vunpack.c.l.b16 %v752
      %v2230 = vunpack.c.l.b16 %v755
      %v2231 = vunpack.c.l.b16 %v759
      %v2232 = vunpack.c.l.b16 %v762
      %v2233 = vunpack.c.l.b16 %v766
      %v2234 = vunpack.c.l.b16 %v769
      %v2235 = vunpack.c.l.b16 %v773
      %v2236 = vunpack.c.l.b16 %v776
      %v2237 = vunpack.c.l.b16 %v780
      %v2238 = vunpack.c.l.b16 %v783
      %v2239 = vunpack.c.l.b16 %v787
      %v2240 = vunpack.c.l.b16 %v790
      %v2241 = vunpack.c.l.b16 %v794
      %v2242 = vunpack.c.l.b16 %v797
      %v2243 = vunpack.c.l.b16 %v801
      %v2244 = vunpack.c.l.b16 %v804
      %v2245 = vunpack.c.l.b16 %v808
      %v2246 = vunpack.c.l.b16 %v811
      %v2247 = vunpack.c.l.b16 %v815
      %v2248 = vunpack.c.l.b16 %v818
      %v2249 = vunpack.c.l.b16 %v822
      %v2250 = vunpack.c.l.b16 %v825
      %v2251 = vunpack.c.l.b16 %v829
      %v2252 = vunpack.c.l.b16 %v832
      %v2253 = vunpack.c.l.b16 %v836
      %v2254 = vunpack.c.l.b16 %v839
      %v2255 = vunpack.c.l.b16 %v843
      %v2256 = vunpack.c.l.b16 %v846
      %v2257 = vunpack.c.l.b16 %v850
      %v2258 = vunpack.c.l.b16 %v853
      %v2259 = vunpack.c.l.b16 %v857
      %v2260 = vunpack.c.l.b16 %v860
      %v2261 = vpack.c.b16 %v2230, %v2229
      %v2262 = vpack.c.b16 %v2232, %v2231
      %v2263 = vpack.c.b16 %v2234, %v2233
      %v2264 = vpack.c.b16 %v2236, %v2235
      %v2265 = vpack.c.b16 %v2238, %v2237
      %v2266 = vpack.c.b16 %v2240, %v2239
      %v2267 = vpack.c.b16 %v2242, %v2241
      %v2268 = vpack.c.b16 %v2244, %v2243
      %v2269 = vpack.c.b16 %v2246, %v2245
      %v2270 = vpack.c.b16 %v2248, %v2247
      %v2271 = vpack.c.b16 %v2250, %v2249
      %v2272 = vpack.c.b16 %v2252, %v2251
      %v2273 = vpack.c.b16 %v2254, %v2253
      %v2274 = vpack.c.b16 %v2256, %v2255
      %v2275 = vpack.c.b16 %v2258, %v2257
      %v2276 = vpack.c.b16 %v2260, %v2259
      %2277 = vrot.lane.b32.xlu0 %v2261, 8
      %v2278 = vpop.permute.xlu0 %2277
      %2279 = vrot.lane.b32.xlu0 %v2262, 8
      %v2280 = vpop.permute.xlu0 %2279
      %2281 = vrot.lane.b32.xlu0 %v2263, 8
      %v2282 = vpop.permute.xlu0 %2281
      %2283 = vrot.lane.b32.xlu0 %v2264, 8
      %v2284 = vpop.permute.xlu0 %2283
      %2285 = vrot.lane.b32.xlu0 %v2265, 8
      %v2286 = vpop.permute.xlu0 %2285
      %2287 = vrot.lane.b32.xlu0 %v2266, 8
      %v2288 = vpop.permute.xlu0 %2287
      %2289 = vrot.lane.b32.xlu0 %v2267, 8
      %v2290 = vpop.permute.xlu0 %2289
      %2291 = vrot.lane.b32.xlu0 %v2268, 8
      %v2292 = vpop.permute.xlu0 %2291
      %2293 = vrot.lane.b32.xlu0 %v2269, 8
      %v2294 = vpop.permute.xlu0 %2293
      %2295 = vrot.lane.b32.xlu0 %v2270, 8
      %v2296 = vpop.permute.xlu0 %2295
      %2297 = vrot.lane.b32.xlu0 %v2271, 8
      %v2298 = vpop.permute.xlu0 %2297
      %2299 = vrot.lane.b32.xlu0 %v2272, 8
      %v2300 = vpop.permute.xlu0 %2299
      %2301 = vrot.lane.b32.xlu0 %v2273, 8
      %v2302 = vpop.permute.xlu0 %2301
      %2303 = vrot.lane.b32.xlu0 %v2274, 8
      %v2304 = vpop.permute.xlu0 %2303
      %2305 = vrot.lane.b32.xlu0 %v2275, 8
      %v2306 = vpop.permute.xlu0 %2305
      %2307 = vrot.lane.b32.xlu0 %v2276, 8
      %v2308 = vpop.permute.xlu0 %2307
      %v2325 = vunpack.c.l.b16 %v865
      %v2326 = vunpack.c.l.b16 %v866
      %v2327 = vunpack.c.l.b16 %v867
      %v2328 = vunpack.c.l.b16 %v868
      %v2329 = vunpack.c.l.b16 %v869
      %v2330 = vunpack.c.l.b16 %v870
      %v2331 = vunpack.c.l.b16 %v871
      %v2332 = vunpack.c.l.b16 %v872
      %v2333 = vunpack.c.l.b16 %v873
      %v2334 = vunpack.c.l.b16 %v874
      %v2335 = vunpack.c.l.b16 %v875
      %v2336 = vunpack.c.l.b16 %v876
      %v2337 = vunpack.c.l.b16 %v877
      %v2338 = vunpack.c.l.b16 %v878
      %v2339 = vunpack.c.l.b16 %v879
      %v2340 = vunpack.c.l.b16 %v880
      %v2341 = vunpack.c.l.b16 %v881
      %v2342 = vunpack.c.l.b16 %v882
      %v2343 = vunpack.c.l.b16 %v883
      %v2344 = vunpack.c.l.b16 %v884
      %v2345 = vunpack.c.l.b16 %v885
      %v2346 = vunpack.c.l.b16 %v886
      %v2347 = vunpack.c.l.b16 %v887
      %v2348 = vunpack.c.l.b16 %v888
      %v2349 = vunpack.c.l.b16 %v889
      %v2350 = vunpack.c.l.b16 %v890
      %v2351 = vunpack.c.l.b16 %v891
      %v2352 = vunpack.c.l.b16 %v892
      %v2353 = vunpack.c.l.b16 %v893
      %v2354 = vunpack.c.l.b16 %v894
      %v2355 = vunpack.c.l.b16 %v895
      %v2356 = vunpack.c.l.b16 %v896
      %v2357 = vpack.c.b16 %v2326, %v2325
      %v2358 = vpack.c.b16 %v2328, %v2327
      %v2359 = vpack.c.b16 %v2330, %v2329
      %v2360 = vpack.c.b16 %v2332, %v2331
      %v2361 = vpack.c.b16 %v2334, %v2333
      %v2362 = vpack.c.b16 %v2336, %v2335
      %v2363 = vpack.c.b16 %v2338, %v2337
      %v2364 = vpack.c.b16 %v2340, %v2339
      %v2365 = vpack.c.b16 %v2342, %v2341
      %v2366 = vpack.c.b16 %v2344, %v2343
      %v2367 = vpack.c.b16 %v2346, %v2345
      %v2368 = vpack.c.b16 %v2348, %v2347
      %v2369 = vpack.c.b16 %v2350, %v2349
      %v2370 = vpack.c.b16 %v2352, %v2351
      %v2371 = vpack.c.b16 %v2354, %v2353
      %v2372 = vpack.c.b16 %v2356, %v2355
      %2373 = vrot.lane.b32.xlu0 %v2357, 12
      %v2374 = vpop.permute.xlu0 %2373
      %2375 = vrot.lane.b32.xlu0 %v2358, 12
      %v2376 = vpop.permute.xlu0 %2375
      %2377 = vrot.lane.b32.xlu0 %v2359, 12
      %v2378 = vpop.permute.xlu0 %2377
      %2379 = vrot.lane.b32.xlu0 %v2360, 12
      %v2380 = vpop.permute.xlu0 %2379
      %2381 = vrot.lane.b32.xlu0 %v2361, 12
      %v2382 = vpop.permute.xlu0 %2381
      %2383 = vrot.lane.b32.xlu0 %v2362, 12
      %v2384 = vpop.permute.xlu0 %2383
      %2385 = vrot.lane.b32.xlu0 %v2363, 12
      %v2386 = vpop.permute.xlu0 %2385
      %2387 = vrot.lane.b32.xlu0 %v2364, 12
      %v2388 = vpop.permute.xlu0 %2387
      %2389 = vrot.lane.b32.xlu0 %v2365, 12
      %v2390 = vpop.permute.xlu0 %2389
      %2391 = vrot.lane.b32.xlu0 %v2366, 12
      %v2392 = vpop.permute.xlu0 %2391
      %2393 = vrot.lane.b32.xlu0 %v2367, 12
      %v2394 = vpop.permute.xlu0 %2393
      %2395 = vrot.lane.b32.xlu0 %v2368, 12
      %v2396 = vpop.permute.xlu0 %2395
      %2397 = vrot.lane.b32.xlu0 %v2369, 12
      %v2398 = vpop.permute.xlu0 %2397
      %2399 = vrot.lane.b32.xlu0 %v2370, 12
      %v2400 = vpop.permute.xlu0 %2399
      %2401 = vrot.lane.b32.xlu0 %v2371, 12
      %v2402 = vpop.permute.xlu0 %2401
      %2403 = vrot.lane.b32.xlu0 %v2372, 12
      %v2404 = vpop.permute.xlu0 %2403
      %v2405 = vunpack.c.l.b16 %v926
      %v2406 = vunpack.c.l.b16 %v936
      %v2407 = vunpack.c.l.b16 %v950
      %v2408 = vunpack.c.l.b16 %v960
      %v2409 = vunpack.c.l.b16 %v974
      %v2410 = vunpack.c.l.b16 %v984
      %v2411 = vunpack.c.l.b16 %v998
      %v2412 = vunpack.c.l.b16 %v1008
      %v2413 = vunpack.c.l.b16 %v1022
      %v2414 = vunpack.c.l.b16 %v1032
      %v2415 = vunpack.c.l.b16 %v1046
      %v2416 = vunpack.c.l.b16 %v1056
      %v2417 = vunpack.c.l.b16 %v1070
      %v2418 = vunpack.c.l.b16 %v1080
      %v2419 = vunpack.c.l.b16 %v1094
      %v2420 = vunpack.c.l.b16 %v1104
      %v2421 = vunpack.c.l.b16 %v1118
      %v2422 = vunpack.c.l.b16 %v1128
      %v2423 = vunpack.c.l.b16 %v1142
      %v2424 = vunpack.c.l.b16 %v1152
      %v2425 = vunpack.c.l.b16 %v1166
      %v2426 = vunpack.c.l.b16 %v1176
      %v2427 = vunpack.c.l.b16 %v1190
      %v2428 = vunpack.c.l.b16 %v1200
      %v2429 = vunpack.c.l.b16 %v1214
      %v2430 = vunpack.c.l.b16 %v1224
      %v2431 = vunpack.c.l.b16 %v1238
      %v2432 = vunpack.c.l.b16 %v1248
      %v2433 = vunpack.c.l.b16 %v1262
      %v2434 = vunpack.c.l.b16 %v1272
      %v2435 = vunpack.c.l.b16 %v1286
      %v2436 = vunpack.c.l.b16 %v1296
      %v2437 = vpack.c.b16 %v2406, %v2405
      %v2438 = vpack.c.b16 %v2408, %v2407
      %v2439 = vpack.c.b16 %v2410, %v2409
      %v2440 = vpack.c.b16 %v2412, %v2411
      %v2441 = vpack.c.b16 %v2414, %v2413
      %v2442 = vpack.c.b16 %v2416, %v2415
      %v2443 = vpack.c.b16 %v2418, %v2417
      %v2444 = vpack.c.b16 %v2420, %v2419
      %v2445 = vpack.c.b16 %v2422, %v2421
      %v2446 = vpack.c.b16 %v2424, %v2423
      %v2447 = vpack.c.b16 %v2426, %v2425
      %v2448 = vpack.c.b16 %v2428, %v2427
      %v2449 = vpack.c.b16 %v2430, %v2429
      %v2450 = vpack.c.b16 %v2432, %v2431
      %v2451 = vpack.c.b16 %v2434, %v2433
      %v2452 = vpack.c.b16 %v2436, %v2435
      %2453 = vrot.lane.b32.xlu0 %v2437, 16
      %v2454 = vpop.permute.xlu0 %2453
      %2455 = vrot.lane.b32.xlu0 %v2438, 16
      %v2456 = vpop.permute.xlu0 %2455
      %2457 = vrot.lane.b32.xlu0 %v2439, 16
      %v2458 = vpop.permute.xlu0 %2457
      %2459 = vrot.lane.b32.xlu0 %v2440, 16
      %v2460 = vpop.permute.xlu0 %2459
      %2461 = vrot.lane.b32.xlu0 %v2441, 16
      %v2462 = vpop.permute.xlu0 %2461
      %2463 = vrot.lane.b32.xlu0 %v2442, 16
      %v2464 = vpop.permute.xlu0 %2463
      %2465 = vrot.lane.b32.xlu0 %v2443, 16
      %v2466 = vpop.permute.xlu0 %2465
      %2467 = vrot.lane.b32.xlu0 %v2444, 16
      %v2468 = vpop.permute.xlu0 %2467
      %2469 = vrot.lane.b32.xlu0 %v2445, 16
      %v2470 = vpop.permute.xlu0 %2469
      %2471 = vrot.lane.b32.xlu0 %v2446, 16
      %v2472 = vpop.permute.xlu0 %2471
      %2473 = vrot.lane.b32.xlu0 %v2447, 16
      %v2474 = vpop.permute.xlu0 %2473
      %2475 = vrot.lane.b32.xlu0 %v2448, 16
      %v2476 = vpop.permute.xlu0 %2475
      %2477 = vrot.lane.b32.xlu0 %v2449, 16
      %v2478 = vpop.permute.xlu0 %2477
      %2479 = vrot.lane.b32.xlu0 %v2450, 16
      %v2480 = vpop.permute.xlu0 %2479
      %2481 = vrot.lane.b32.xlu0 %v2451, 16
      %v2482 = vpop.permute.xlu0 %2481
      %2483 = vrot.lane.b32.xlu0 %v2452, 16
      %v2484 = vpop.permute.xlu0 %2483
      %v2485 = vunpack.c.l.b16 %v1364
      %v2486 = vunpack.c.l.b16 %v1367
      %v2487 = vunpack.c.l.b16 %v1371
      %v2488 = vunpack.c.l.b16 %v1374
      %v2489 = vunpack.c.l.b16 %v1378
      %v2490 = vunpack.c.l.b16 %v1381
      %v2491 = vunpack.c.l.b16 %v1385
      %v2492 = vunpack.c.l.b16 %v1388
      %v2493 = vunpack.c.l.b16 %v1392
      %v2494 = vunpack.c.l.b16 %v1395
      %v2495 = vunpack.c.l.b16 %v1399
      %v2496 = vunpack.c.l.b16 %v1402
      %v2497 = vunpack.c.l.b16 %v1406
      %v2498 = vunpack.c.l.b16 %v1409
      %v2499 = vunpack.c.l.b16 %v1413
      %v2500 = vunpack.c.l.b16 %v1416
      %v2501 = vunpack.c.l.b16 %v1420
      %v2502 = vunpack.c.l.b16 %v1423
      %v2503 = vunpack.c.l.b16 %v1427
      %v2504 = vunpack.c.l.b16 %v1430
      %v2505 = vunpack.c.l.b16 %v1434
      %v2506 = vunpack.c.l.b16 %v1437
      %v2507 = vunpack.c.l.b16 %v1441
      %v2508 = vunpack.c.l.b16 %v1444
      %v2509 = vunpack.c.l.b16 %v1448
      %v2510 = vunpack.c.l.b16 %v1451
      %v2511 = vunpack.c.l.b16 %v1455
      %v2512 = vunpack.c.l.b16 %v1458
      %v2513 = vunpack.c.l.b16 %v1462
      %v2514 = vunpack.c.l.b16 %v1465
      %v2515 = vunpack.c.l.b16 %v1469
      %v2516 = vunpack.c.l.b16 %v1472
      %v2517 = vpack.c.b16 %v2486, %v2485
      %v2518 = vpack.c.b16 %v2488, %v2487
      %v2519 = vpack.c.b16 %v2490, %v2489
      %v2520 = vpack.c.b16 %v2492, %v2491
      %v2521 = vpack.c.b16 %v2494, %v2493
      %v2522 = vpack.c.b16 %v2496, %v2495
      %v2523 = vpack.c.b16 %v2498, %v2497
      %v2524 = vpack.c.b16 %v2500, %v2499
      %v2525 = vpack.c.b16 %v2502, %v2501
      %v2526 = vpack.c.b16 %v2504, %v2503
      %v2527 = vpack.c.b16 %v2506, %v2505
      %v2528 = vpack.c.b16 %v2508, %v2507
      %v2529 = vpack.c.b16 %v2510, %v2509
      %v2530 = vpack.c.b16 %v2512, %v2511
      %v2531 = vpack.c.b16 %v2514, %v2513
      %v2532 = vpack.c.b16 %v2516, %v2515
      %2533 = vrot.lane.b32.xlu0 %v2517, 20
      %v2534 = vpop.permute.xlu0 %2533
      %2535 = vrot.lane.b32.xlu0 %v2518, 20
      %v2536 = vpop.permute.xlu0 %2535
      %2537 = vrot.lane.b32.xlu0 %v2519, 20
      %v2538 = vpop.permute.xlu0 %2537
      %2539 = vrot.lane.b32.xlu0 %v2520, 20
      %v2540 = vpop.permute.xlu0 %2539
      %2541 = vrot.lane.b32.xlu0 %v2521, 20
      %v2542 = vpop.permute.xlu0 %2541
      %2543 = vrot.lane.b32.xlu0 %v2522, 20
      %v2544 = vpop.permute.xlu0 %2543
      %2545 = vrot.lane.b32.xlu0 %v2523, 20
      %v2546 = vpop.permute.xlu0 %2545
      %2547 = vrot.lane.b32.xlu0 %v2524, 20
      %v2548 = vpop.permute.xlu0 %2547
      %2549 = vrot.lane.b32.xlu0 %v2525, 20
      %v2550 = vpop.permute.xlu0 %2549
      %2551 = vrot.lane.b32.xlu0 %v2526, 20
      %v2552 = vpop.permute.xlu0 %2551
      %2553 = vrot.lane.b32.xlu0 %v2527, 20
      %v2554 = vpop.permute.xlu0 %2553
      %2555 = vrot.lane.b32.xlu0 %v2528, 20
      %v2556 = vpop.permute.xlu0 %2555
      %2557 = vrot.lane.b32.xlu0 %v2529, 20
      %v2558 = vpop.permute.xlu0 %2557
      %2559 = vrot.lane.b32.xlu0 %v2530, 20
      %v2560 = vpop.permute.xlu0 %2559
      %2561 = vrot.lane.b32.xlu0 %v2531, 20
      %v2562 = vpop.permute.xlu0 %2561
      %2563 = vrot.lane.b32.xlu0 %v2532, 20
      %v2564 = vpop.permute.xlu0 %2563
      %v2581 = vunpack.c.l.b16 %v1477
      %v2582 = vunpack.c.l.b16 %v1478
      %v2583 = vunpack.c.l.b16 %v1479
      %v2584 = vunpack.c.l.b16 %v1480
      %v2585 = vunpack.c.l.b16 %v1481
      %v2586 = vunpack.c.l.b16 %v1482
      %v2587 = vunpack.c.l.b16 %v1483
      %v2588 = vunpack.c.l.b16 %v1484
      %v2589 = vunpack.c.l.b16 %v1485
      %v2590 = vunpack.c.l.b16 %v1486
      %v2591 = vunpack.c.l.b16 %v1487
      %v2592 = vunpack.c.l.b16 %v1488
      %v2593 = vunpack.c.l.b16 %v1489
      %v2594 = vunpack.c.l.b16 %v1490
      %v2595 = vunpack.c.l.b16 %v1491
      %v2596 = vunpack.c.l.b16 %v1492
      %v2597 = vunpack.c.l.b16 %v1493
      %v2598 = vunpack.c.l.b16 %v1494
      %v2599 = vunpack.c.l.b16 %v1495
      %v2600 = vunpack.c.l.b16 %v1496
      %v2601 = vunpack.c.l.b16 %v1497
      %v2602 = vunpack.c.l.b16 %v1498
      %v2603 = vunpack.c.l.b16 %v1499
      %v2604 = vunpack.c.l.b16 %v1500
      %v2605 = vunpack.c.l.b16 %v1501
      %v2606 = vunpack.c.l.b16 %v1502
      %v2607 = vunpack.c.l.b16 %v1503
      %v2608 = vunpack.c.l.b16 %v1504
      %v2609 = vunpack.c.l.b16 %v1505
      %v2610 = vunpack.c.l.b16 %v1506
      %v2611 = vunpack.c.l.b16 %v1507
      %v2612 = vunpack.c.l.b16 %v1508
      %v2613 = vpack.c.b16 %v2582, %v2581
      %v2614 = vpack.c.b16 %v2584, %v2583
      %v2615 = vpack.c.b16 %v2586, %v2585
      %v2616 = vpack.c.b16 %v2588, %v2587
      %v2617 = vpack.c.b16 %v2590, %v2589
      %v2618 = vpack.c.b16 %v2592, %v2591
      %v2619 = vpack.c.b16 %v2594, %v2593
      %v2620 = vpack.c.b16 %v2596, %v2595
      %v2621 = vpack.c.b16 %v2598, %v2597
      %v2622 = vpack.c.b16 %v2600, %v2599
      %v2623 = vpack.c.b16 %v2602, %v2601
      %v2624 = vpack.c.b16 %v2604, %v2603
      %v2625 = vpack.c.b16 %v2606, %v2605
      %v2626 = vpack.c.b16 %v2608, %v2607
      %v2627 = vpack.c.b16 %v2610, %v2609
      %v2628 = vpack.c.b16 %v2612, %v2611
      %2629 = vrot.lane.b32.xlu0 %v2613, 24
      %v2630 = vpop.permute.xlu0 %2629
      %2631 = vrot.lane.b32.xlu0 %v2614, 24
      %v2632 = vpop.permute.xlu0 %2631
      %2633 = vrot.lane.b32.xlu0 %v2615, 24
      %v2634 = vpop.permute.xlu0 %2633
      %2635 = vrot.lane.b32.xlu0 %v2616, 24
      %v2636 = vpop.permute.xlu0 %2635
      %2637 = vrot.lane.b32.xlu0 %v2617, 24
      %v2638 = vpop.permute.xlu0 %2637
      %2639 = vrot.lane.b32.xlu0 %v2618, 24
      %v2640 = vpop.permute.xlu0 %2639
      %2641 = vrot.lane.b32.xlu0 %v2619, 24
      %v2642 = vpop.permute.xlu0 %2641
      %2643 = vrot.lane.b32.xlu0 %v2620, 24
      %v2644 = vpop.permute.xlu0 %2643
      %2645 = vrot.lane.b32.xlu0 %v2621, 24
      %v2646 = vpop.permute.xlu0 %2645
      %2647 = vrot.lane.b32.xlu0 %v2622, 24
      %v2648 = vpop.permute.xlu0 %2647
      %2649 = vrot.lane.b32.xlu0 %v2623, 24
      %v2650 = vpop.permute.xlu0 %2649
      %2651 = vrot.lane.b32.xlu0 %v2624, 24
      %v2652 = vpop.permute.xlu0 %2651
      %2653 = vrot.lane.b32.xlu0 %v2625, 24
      %v2654 = vpop.permute.xlu0 %2653
      %2655 = vrot.lane.b32.xlu0 %v2626, 24
      %v2656 = vpop.permute.xlu0 %2655
      %2657 = vrot.lane.b32.xlu0 %v2627, 24
      %v2658 = vpop.permute.xlu0 %2657
      %2659 = vrot.lane.b32.xlu0 %v2628, 24
      %v2660 = vpop.permute.xlu0 %2659
      %v2661 = vunpack.c.l.b16 %v1538
      %v2662 = vunpack.c.l.b16 %v1548
      %v2663 = vunpack.c.l.b16 %v1562
      %v2664 = vunpack.c.l.b16 %v1572
      %v2665 = vunpack.c.l.b16 %v1586
      %v2666 = vunpack.c.l.b16 %v1596
      %v2667 = vunpack.c.l.b16 %v1610
      %v2668 = vunpack.c.l.b16 %v1620
      %v2669 = vunpack.c.l.b16 %v1634
      %v2670 = vunpack.c.l.b16 %v1644
      %v2671 = vunpack.c.l.b16 %v1658
      %v2672 = vunpack.c.l.b16 %v1668
      %v2673 = vunpack.c.l.b16 %v1682
      %v2674 = vunpack.c.l.b16 %v1692
      %v2675 = vunpack.c.l.b16 %v1706
      %v2676 = vunpack.c.l.b16 %v1716
      %v2677 = vunpack.c.l.b16 %v1730
      %v2678 = vunpack.c.l.b16 %v1740
      %v2679 = vunpack.c.l.b16 %v1754
      %v2680 = vunpack.c.l.b16 %v1764
      %v2681 = vunpack.c.l.b16 %v1778
      %v2682 = vunpack.c.l.b16 %v1788
      %v2683 = vunpack.c.l.b16 %v1802
      %v2684 = vunpack.c.l.b16 %v1812
      %v2685 = vunpack.c.l.b16 %v1826
      %v2686 = vunpack.c.l.b16 %v1836
      %v2687 = vunpack.c.l.b16 %v1850
      %v2688 = vunpack.c.l.b16 %v1860
      %v2689 = vunpack.c.l.b16 %v1874
      %v2690 = vunpack.c.l.b16 %v1884
      %v2691 = vunpack.c.l.b16 %v1898
      %v2692 = vunpack.c.l.b16 %v1908
      %v2693 = vpack.c.b16 %v2662, %v2661
      %v2694 = vpack.c.b16 %v2664, %v2663
      %v2695 = vpack.c.b16 %v2666, %v2665
      %v2696 = vpack.c.b16 %v2668, %v2667
      %v2697 = vpack.c.b16 %v2670, %v2669
      %v2698 = vpack.c.b16 %v2672, %v2671
      %v2699 = vpack.c.b16 %v2674, %v2673
      %v2700 = vpack.c.b16 %v2676, %v2675
      %v2701 = vpack.c.b16 %v2678, %v2677
      %v2702 = vpack.c.b16 %v2680, %v2679
      %v2703 = vpack.c.b16 %v2682, %v2681
      %v2704 = vpack.c.b16 %v2684, %v2683
      %v2705 = vpack.c.b16 %v2686, %v2685
      %v2706 = vpack.c.b16 %v2688, %v2687
      %v2707 = vpack.c.b16 %v2690, %v2689
      %v2708 = vpack.c.b16 %v2692, %v2691
      %2709 = vrot.lane.b32.xlu0 %v2693, 28
      %v2710 = vpop.permute.xlu0 %2709
      %2711 = vrot.lane.b32.xlu0 %v2694, 28
      %v2712 = vpop.permute.xlu0 %2711
      %2713 = vrot.lane.b32.xlu0 %v2695, 28
      %v2714 = vpop.permute.xlu0 %2713
      %2715 = vrot.lane.b32.xlu0 %v2696, 28
      %v2716 = vpop.permute.xlu0 %2715
      %2717 = vrot.lane.b32.xlu0 %v2697, 28
      %v2718 = vpop.permute.xlu0 %2717
      %2719 = vrot.lane.b32.xlu0 %v2698, 28
      %v2720 = vpop.permute.xlu0 %2719
      %2721 = vrot.lane.b32.xlu0 %v2699, 28
      %v2722 = vpop.permute.xlu0 %2721
      %2723 = vrot.lane.b32.xlu0 %v2700, 28
      %v2724 = vpop.permute.xlu0 %2723
      %2725 = vrot.lane.b32.xlu0 %v2701, 28
      %v2726 = vpop.permute.xlu0 %2725
      %2727 = vrot.lane.b32.xlu0 %v2702, 28
      %v2728 = vpop.permute.xlu0 %2727
      %2729 = vrot.lane.b32.xlu0 %v2703, 28
      %v2730 = vpop.permute.xlu0 %2729
      %2731 = vrot.lane.b32.xlu0 %v2704, 28
      %v2732 = vpop.permute.xlu0 %2731
      %2733 = vrot.lane.b32.xlu0 %v2705, 28
      %v2734 = vpop.permute.xlu0 %2733
      %2735 = vrot.lane.b32.xlu0 %v2706, 28
      %v2736 = vpop.permute.xlu0 %2735
      %2737 = vrot.lane.b32.xlu0 %v2707, 28
      %v2738 = vpop.permute.xlu0 %2737
      %2739 = vrot.lane.b32.xlu0 %v2708, 28
      %v2740 = vpop.permute.xlu0 %2739
      %v2741 = vunpack.c.l.b16 %v1976
      %v2742 = vunpack.c.l.b16 %v1979
      %v2743 = vunpack.c.l.b16 %v1983
      %v2744 = vunpack.c.l.b16 %v1986
      %v2745 = vunpack.c.l.b16 %v1990
      %v2746 = vunpack.c.l.b16 %v1993
      %v2747 = vunpack.c.l.b16 %v1997
      %v2748 = vunpack.c.l.b16 %v2000
      %v2749 = vunpack.c.l.b16 %v2004
      %v2750 = vunpack.c.l.b16 %v2007
      %v2751 = vunpack.c.l.b16 %v2011
      %v2752 = vunpack.c.l.b16 %v2014
      %v2753 = vunpack.c.l.b16 %v2018
      %v2754 = vunpack.c.l.b16 %v2021
      %v2755 = vunpack.c.l.b16 %v2025
      %v2756 = vunpack.c.l.b16 %v2028
      %v2757 = vunpack.c.l.b16 %v2032
      %v2758 = vunpack.c.l.b16 %v2035
      %v2759 = vunpack.c.l.b16 %v2039
      %v2760 = vunpack.c.l.b16 %v2042
      %v2761 = vunpack.c.l.b16 %v2046
      %v2762 = vunpack.c.l.b16 %v2049
      %v2763 = vunpack.c.l.b16 %v2053
      %v2764 = vunpack.c.l.b16 %v2056
      %v2765 = vunpack.c.l.b16 %v2060
      %v2766 = vunpack.c.l.b16 %v2063
      %v2767 = vunpack.c.l.b16 %v2067
      %v2768 = vunpack.c.l.b16 %v2070
      %v2769 = vunpack.c.l.b16 %v2074
      %v2770 = vunpack.c.l.b16 %v2077
      %v2771 = vunpack.c.l.b16 %v2081
      %v2772 = vunpack.c.l.b16 %v2084
      %v2773 = vpack.c.b16 %v2742, %v2741
      %v2774 = vpack.c.b16 %v2744, %v2743
      %v2775 = vpack.c.b16 %v2746, %v2745
      %v2776 = vpack.c.b16 %v2748, %v2747
      %v2777 = vpack.c.b16 %v2750, %v2749
      %v2778 = vpack.c.b16 %v2752, %v2751
      %v2779 = vpack.c.b16 %v2754, %v2753
      %v2780 = vpack.c.b16 %v2756, %v2755
      %v2781 = vpack.c.b16 %v2758, %v2757
      %v2782 = vpack.c.b16 %v2760, %v2759
      %v2783 = vpack.c.b16 %v2762, %v2761
      %v2784 = vpack.c.b16 %v2764, %v2763
      %v2785 = vpack.c.b16 %v2766, %v2765
      %v2786 = vpack.c.b16 %v2768, %v2767
      %v2787 = vpack.c.b16 %v2770, %v2769
      %v2788 = vpack.c.b16 %v2772, %v2771
      %2789 = vrot.lane.b32.xlu0 %v2773, 32
      %v2790 = vpop.permute.xlu0 %2789
      %2791 = vrot.lane.b32.xlu0 %v2774, 32
      %v2792 = vpop.permute.xlu0 %2791
      %2793 = vrot.lane.b32.xlu0 %v2775, 32
      %v2794 = vpop.permute.xlu0 %2793
      %2795 = vrot.lane.b32.xlu0 %v2776, 32
      %v2796 = vpop.permute.xlu0 %2795
      %2797 = vrot.lane.b32.xlu0 %v2777, 32
      %v2798 = vpop.permute.xlu0 %2797
      %2799 = vrot.lane.b32.xlu0 %v2778, 32
      %v2800 = vpop.permute.xlu0 %2799
      %2801 = vrot.lane.b32.xlu0 %v2779, 32
      %v2802 = vpop.permute.xlu0 %2801
      %2803 = vrot.lane.b32.xlu0 %v2780, 32
      %v2804 = vpop.permute.xlu0 %2803
      %2805 = vrot.lane.b32.xlu0 %v2781, 32
      %v2806 = vpop.permute.xlu0 %2805
      %2807 = vrot.lane.b32.xlu0 %v2782, 32
      %v2808 = vpop.permute.xlu0 %2807
      %2809 = vrot.lane.b32.xlu0 %v2783, 32
      %v2810 = vpop.permute.xlu0 %2809
      %2811 = vrot.lane.b32.xlu0 %v2784, 32
      %v2812 = vpop.permute.xlu0 %2811
      %2813 = vrot.lane.b32.xlu0 %v2785, 32
      %v2814 = vpop.permute.xlu0 %2813
      %2815 = vrot.lane.b32.xlu0 %v2786, 32
      %v2816 = vpop.permute.xlu0 %2815
      %2817 = vrot.lane.b32.xlu0 %v2787, 32
      %v2818 = vpop.permute.xlu0 %2817
      %2819 = vrot.lane.b32.xlu0 %v2788, 32
      %v2820 = vpop.permute.xlu0 %2819
      %vm2821 = vcmask 31744
      %v2824 = vsel %vm2821, %v2133, %v2198
      %v2827 = vsel %vm2821, %v2134, %v2200
      %v2830 = vsel %vm2821, %v2135, %v2202
      %v2833 = vsel %vm2821, %v2136, %v2204
      %v2836 = vsel %vm2821, %v2137, %v2206
      %v2839 = vsel %vm2821, %v2138, %v2208
      %v2842 = vsel %vm2821, %v2139, %v2210
      %v2845 = vsel %vm2821, %v2140, %v2212
      %v2848 = vsel %vm2821, %v2141, %v2214
      %v2851 = vsel %vm2821, %v2142, %v2216
      %v2854 = vsel %vm2821, %v2143, %v2218
      %v2857 = vsel %vm2821, %v2144, %v2220
      %v2860 = vsel %vm2821, %v2145, %v2222
      %v2863 = vsel %vm2821, %v2146, %v2224
      %v2866 = vsel %vm2821, %v2147, %v2226
      %v2869 = vsel %vm2821, %v2148, %v2228
      %vm2870 = vcmask 64512
      %v2872 = vsel %vm2870, %v2824, %v2278
      %v2874 = vsel %vm2870, %v2827, %v2280
      %v2876 = vsel %vm2870, %v2830, %v2282
      %v2878 = vsel %vm2870, %v2833, %v2284
      %v2880 = vsel %vm2870, %v2836, %v2286
      %v2882 = vsel %vm2870, %v2839, %v2288
      %v2884 = vsel %vm2870, %v2842, %v2290
      %v2886 = vsel %vm2870, %v2845, %v2292
      %v2888 = vsel %vm2870, %v2848, %v2294
      %v2890 = vsel %vm2870, %v2851, %v2296
      %v2892 = vsel %vm2870, %v2854, %v2298
      %v2894 = vsel %vm2870, %v2857, %v2300
      %v2896 = vsel %vm2870, %v2860, %v2302
      %v2898 = vsel %vm2870, %v2863, %v2304
      %v2900 = vsel %vm2870, %v2866, %v2306
      %v2902 = vsel %vm2870, %v2869, %v2308
      %vm2903 = vcmask 97280
      %v2905 = vsel %vm2903, %v2872, %v2374
      %v2907 = vsel %vm2903, %v2874, %v2376
      %v2909 = vsel %vm2903, %v2876, %v2378
      %v2911 = vsel %vm2903, %v2878, %v2380
      %v2913 = vsel %vm2903, %v2880, %v2382
      %v2915 = vsel %vm2903, %v2882, %v2384
      %v2917 = vsel %vm2903, %v2884, %v2386
      %v2919 = vsel %vm2903, %v2886, %v2388
      %v2921 = vsel %vm2903, %v2888, %v2390
      %v2923 = vsel %vm2903, %v2890, %v2392
      %v2925 = vsel %vm2903, %v2892, %v2394
      %v2927 = vsel %vm2903, %v2894, %v2396
      %v2929 = vsel %vm2903, %v2896, %v2398
      %v2931 = vsel %vm2903, %v2898, %v2400
      %v2933 = vsel %vm2903, %v2900, %v2402
      %v2935 = vsel %vm2903, %v2902, %v2404
      %vm2936 = vcmask 130048
      %v2938 = vsel %vm2936, %v2905, %v2454
      %v2940 = vsel %vm2936, %v2907, %v2456
      %v2942 = vsel %vm2936, %v2909, %v2458
      %v2944 = vsel %vm2936, %v2911, %v2460
      %v2946 = vsel %vm2936, %v2913, %v2462
      %v2948 = vsel %vm2936, %v2915, %v2464
      %v2950 = vsel %vm2936, %v2917, %v2466
      %v2952 = vsel %vm2936, %v2919, %v2468
      %v2954 = vsel %vm2936, %v2921, %v2470
      %v2956 = vsel %vm2936, %v2923, %v2472
      %v2958 = vsel %vm2936, %v2925, %v2474
      %v2960 = vsel %vm2936, %v2927, %v2476
      %v2962 = vsel %vm2936, %v2929, %v2478
      %v2964 = vsel %vm2936, %v2931, %v2480
      %v2966 = vsel %vm2936, %v2933, %v2482
      %v2968 = vsel %vm2936, %v2935, %v2484
      %vm2969 = vcmask 162816
      %v2971 = vsel %vm2969, %v2938, %v2534
      %v2973 = vsel %vm2969, %v2940, %v2536
      %v2975 = vsel %vm2969, %v2942, %v2538
      %v2977 = vsel %vm2969, %v2944, %v2540
      %v2979 = vsel %vm2969, %v2946, %v2542
      %v2981 = vsel %vm2969, %v2948, %v2544
      %v2983 = vsel %vm2969, %v2950, %v2546
      %v2985 = vsel %vm2969, %v2952, %v2548
      %v2987 = vsel %vm2969, %v2954, %v2550
      %v2989 = vsel %vm2969, %v2956, %v2552
      %v2991 = vsel %vm2969, %v2958, %v2554
      %v2993 = vsel %vm2969, %v2960, %v2556
      %v2995 = vsel %vm2969, %v2962, %v2558
      %v2997 = vsel %vm2969, %v2964, %v2560
      %v2999 = vsel %vm2969, %v2966, %v2562
      %v3001 = vsel %vm2969, %v2968, %v2564
      %vm3002 = vcmask 195584
      %v3004 = vsel %vm3002, %v2971, %v2630
      %v3006 = vsel %vm3002, %v2973, %v2632
      %v3008 = vsel %vm3002, %v2975, %v2634
      %v3010 = vsel %vm3002, %v2977, %v2636
      %v3012 = vsel %vm3002, %v2979, %v2638
      %v3014 = vsel %vm3002, %v2981, %v2640
      %v3016 = vsel %vm3002, %v2983, %v2642
      %v3018 = vsel %vm3002, %v2985, %v2644
      %v3020 = vsel %vm3002, %v2987, %v2646
      %v3022 = vsel %vm3002, %v2989, %v2648
      %v3024 = vsel %vm3002, %v2991, %v2650
      %v3026 = vsel %vm3002, %v2993, %v2652
      %v3028 = vsel %vm3002, %v2995, %v2654
      %v3030 = vsel %vm3002, %v2997, %v2656
      %v3032 = vsel %vm3002, %v2999, %v2658
      %v3034 = vsel %vm3002, %v3001, %v2660
      %vm3035 = vcmask 228352
      %v3037 = vsel %vm3035, %v3004, %v2710
      %v3039 = vsel %vm3035, %v3006, %v2712
      %v3041 = vsel %vm3035, %v3008, %v2714
      %v3043 = vsel %vm3035, %v3010, %v2716
      %v3045 = vsel %vm3035, %v3012, %v2718
      %v3047 = vsel %vm3035, %v3014, %v2720
      %v3049 = vsel %vm3035, %v3016, %v2722
      %v3051 = vsel %vm3035, %v3018, %v2724
      %v3053 = vsel %vm3035, %v3020, %v2726
      %v3055 = vsel %vm3035, %v3022, %v2728
      %v3057 = vsel %vm3035, %v3024, %v2730
      %v3059 = vsel %vm3035, %v3026, %v2732
      %v3061 = vsel %vm3035, %v3028, %v2734
      %v3063 = vsel %vm3035, %v3030, %v2736
      %v3065 = vsel %vm3035, %v3032, %v2738
      %v3067 = vsel %vm3035, %v3034, %v2740
      %vm3068 = vcmask 261120
      %v3070 = vsel %vm3068, %v3037, %v2790
      %v3072 = vsel %vm3068, %v3039, %v2792
      %v3074 = vsel %vm3068, %v3041, %v2794
      %v3076 = vsel %vm3068, %v3043, %v2796
      %v3078 = vsel %vm3068, %v3045, %v2798
      %v3080 = vsel %vm3068, %v3047, %v2800
      %v3082 = vsel %vm3068, %v3049, %v2802
      %v3084 = vsel %vm3068, %v3051, %v2804
      %v3086 = vsel %vm3068, %v3053, %v2806
      %v3088 = vsel %vm3068, %v3055, %v2808
      %v3090 = vsel %vm3068, %v3057, %v2810
      %v3092 = vsel %vm3068, %v3059, %v2812
      %v3094 = vsel %vm3068, %v3061, %v2814
      %v3096 = vsel %vm3068, %v3063, %v2816
      %v3098 = vsel %vm3068, %v3065, %v2818
      %v3100 = vsel %vm3068, %v3067, %v2820
      %v3101 = vld [vmem:[%s224] sm:$0xf]
      %v3102 = vld [vmem:[%s224 + $0x4] sm:$0xf]
      %v3103 = vld [vmem:[%s224 + $0x8] sm:$0xf]
      %v3104 = vld [vmem:[%s224 + $0xc] sm:$0xf]
      %v3105 = vld [vmem:[%s224 + $0x10] sm:$0x3]
      %v3106 = vld [vmem:[%s227] sm:$0x1]
      %v3108 = vlaneseq
      %v3109 = vshrl.u32 %v3108, 7
      %v3110 = vsub.s32 0, %v3109
      %v3111 = vrot.slane %v3106, %v3110
      %v3118 = vunpack.c.l.b16 %v3101
      %v3119 = vunpack.c.l.b16 %v3102
      %v3120 = vunpack.c.l.b16 %v3103
      %v3121 = vunpack.c.l.b16 %v3104
      %v3122 = vunpack.c.l.b16 %v3105
      %v3123 = vpack.c.b16 %v3119, %v3118
      %v3124 = vpack.c.b16 %v3121, %v3120
      %v3125 = vpack.c.b16 %v3122, %v3122
      %vm3128 = vcmask 293888
      %v3129 = vsel %vm3128, %v3070, 0
      %v3131 = vsel %vm3128, %v3072, 0
      %v3133 = vsel %vm3128, %v3074, 0
      %v3135 = vsel %vm3128, %v3076, 0
      %v3137 = vsel %vm3128, %v3078, 0
      %v3139 = vsel %vm3128, %v3080, 0
      %v3141 = vsel %vm3128, %v3082, 0
      %v3143 = vsel %vm3128, %v3084, 0
      %v3145 = vsel %vm3128, %v3086, 0
      %v3147 = vsel %vm3128, %v3088, 0
      %v3149 = vsel %vm3128, %v3090, 0
      %v3151 = vsel %vm3128, %v3092, 0
      %v3153 = vsel %vm3128, %v3094, 0
      %v3155 = vsel %vm3128, %v3096, 0
      %v3157 = vsel %vm3128, %v3098, 0
      %v3159 = vsel %vm3128, %v3100, 0
      %vm3161 = vcmask 1041408
      %v3163 = vsel %vm3161, %v3125, 0
      %3165 = vmatprep.subr.bf16.mxu0 0
      %3166 = vmatpush1.bf16.msra.mxu0 %v3123
      %3167 = vmatprep.subr.bf16.mxu0 0
      %3168 = vmatpush1.bf16.msra.mxu0 %v3124
      %3169 = vmatprep.subr.bf16.mxu0 0
      %3170 = vmatpush1.bf16.msra.mxu0 %v3163
      %3171 = vmatprep.subr.bf16.mxu0 0
      %3172 = vmatpush1.bf16.msra.mxu0 0
      %3173 = vmatprep.subr.bf16.mxu0 0
      %3174 = vmatpush1.bf16.msra.mxu0 0
      %3175 = vmatprep.subr.bf16.mxu0 0
      %3176 = vmatpush1.bf16.msra.mxu0 0
      %3177 = vmatprep.subr.bf16.mxu0 0
      %3178 = vmatpush1.bf16.msra.mxu0 0
      %3179 = vmatprep.subr.bf16.mxu0 0
      %3180 = vmatpush1.bf16.msra.mxu0 0
      %3181 = vmatprep.subr.bf16.mxu0 0
      %3182 = vmatpush1.bf16.msra.mxu0 0
      %3183 = vmatprep.subr.bf16.mxu0 0
      %3184 = vmatpush1.bf16.msra.mxu0 0
      %3185 = vmatprep.subr.bf16.mxu0 0
      %3186 = vmatpush1.bf16.msra.mxu0 0
      %3187 = vmatprep.subr.bf16.mxu0 0
      %3188 = vmatpush1.bf16.msra.mxu0 0
      %3189 = vmatprep.subr.bf16.mxu0 0
      %3190 = vmatpush1.bf16.msra.mxu0 0
      %3191 = vmatprep.subr.bf16.mxu0 0
      %3192 = vmatpush1.bf16.msra.mxu0 0
      %3193 = vmatprep.subr.bf16.mxu0 0
      %3194 = vmatpush1.bf16.msra.mxu0 0
      %3195 = vmatprep.subr.bf16.mxu0 0
      %3196 = vmatpush1.bf16.msra.mxu0 0
      %3197 = vmatprep.mubr.bf16.mxu0 0
      %3198 = vmatmul.mubr.bf16.gmra.mrb[0].mxu0 %v3129
      %v3199 = vpop.f32.mrb[0].mxu0
      %v3200 = vadd.f32 %v3111, %v3199
      %v3201 = vpop.f32.mrb[0].mxu0
      %v3202 = vpop.f32.mrb[0].mxu0
      %v3203 = vadd.f32 %v3111, %v3202
      %v3204 = vpop.f32.mrb[0].mxu0
      %3205 = vmatprep.mubr.bf16.mxu0 0
      %3206 = vmatmul.mubr.bf16.gmra.mrb[0].mxu0 %v3131
      %v3207 = vpop.f32.mrb[0].mxu0
      %v3208 = vadd.f32 %v3111, %v3207
      %v3209 = vpop.f32.mrb[0].mxu0
      %v3210 = vpop.f32.mrb[0].mxu0
      %v3211 = vadd.f32 %v3111, %v3210
      %v3212 = vpop.f32.mrb[0].mxu0
      %3213 = vmatprep.mubr.bf16.mxu0 0
      %3214 = vmatmul.mubr.bf16.gmra.mrb[0].mxu0 %v3133
      %v3215 = vpop.f32.mrb[0].mxu0
      %v3216 = vadd.f32 %v3111, %v3215
      %v3217 = vpop.f32.mrb[0].mxu0
      %v3218 = vpop.f32.mrb[0].mxu0
      %v3219 = vadd.f32 %v3111, %v3218
      %v3220 = vpop.f32.mrb[0].mxu0
      %3221 = vmatprep.mubr.bf16.mxu0 0
      %3222 = vmatmul.mubr.bf16.gmra.mrb[0].mxu0 %v3135
      %v3223 = vpop.f32.mrb[0].mxu0
      %v3224 = vadd.f32 %v3111, %v3223
      %v3225 = vpop.f32.mrb[0].mxu0
      %v3226 = vpop.f32.mrb[0].mxu0
      %v3227 = vadd.f32 %v3111, %v3226
      %v3228 = vpop.f32.mrb[0].mxu0
      %3229 = vmatprep.mubr.bf16.mxu0 0
      %3230 = vmatmul.mubr.bf16.gmra.mrb[0].mxu0 %v3137
      %v3231 = vpop.f32.mrb[0].mxu0
      %v3232 = vadd.f32 %v3111, %v3231
      %v3233 = vpop.f32.mrb[0].mxu0
      %v3234 = vpop.f32.mrb[0].mxu0
      %v3235 = vadd.f32 %v3111, %v3234
      %v3236 = vpop.f32.mrb[0].mxu0
      %3237 = vmatprep.mubr.bf16.mxu0 0
      %3238 = vmatmul.mubr.bf16.gmra.mrb[0].mxu0 %v3139
      %v3239 = vpop.f32.mrb[0].mxu0
      %v3240 = vadd.f32 %v3111, %v3239
      %v3241 = vpop.f32.mrb[0].mxu0
      %v3242 = vpop.f32.mrb[0].mxu0
      %v3243 = vadd.f32 %v3111, %v3242
      %v3244 = vpop.f32.mrb[0].mxu0
      %3245 = vmatprep.mubr.bf16.mxu0 0
      %3246 = vmatmul.mubr.bf16.gmra.mrb[0].mxu0 %v3141
      %v3247 = vpop.f32.mrb[0].mxu0
      %v3248 = vadd.f32 %v3111, %v3247
      %v3249 = vpop.f32.mrb[0].mxu0
      %v3250 = vpop.f32.mrb[0].mxu0
      %v3251 = vadd.f32 %v3111, %v3250
      %v3252 = vpop.f32.mrb[0].mxu0
      %3253 = vmatprep.mubr.bf16.mxu0 0
      %3254 = vmatmul.mubr.bf16.gmra.mrb[0].mxu0 %v3143
      %v3255 = vpop.f32.mrb[0].mxu0
      %v3256 = vadd.f32 %v3111, %v3255
      %v3257 = vpop.f32.mrb[0].mxu0
      %v3258 = vpop.f32.mrb[0].mxu0
      %v3259 = vadd.f32 %v3111, %v3258
      %v3260 = vpop.f32.mrb[0].mxu0
      %3261 = vmatprep.mubr.bf16.mxu0 0
      %3262 = vmatmul.mubr.bf16.gmra.mrb[0].mxu0 %v3145
      %v3263 = vpop.f32.mrb[0].mxu0
      %v3264 = vadd.f32 %v3111, %v3263
      %v3265 = vpop.f32.mrb[0].mxu0
      %v3266 = vpop.f32.mrb[0].mxu0
      %v3267 = vadd.f32 %v3111, %v3266
      %v3268 = vpop.f32.mrb[0].mxu0
      %3269 = vmatprep.mubr.bf16.mxu0 0
      %3270 = vmatmul.mubr.bf16.gmra.mrb[0].mxu0 %v3147
      %v3271 = vpop.f32.mrb[0].mxu0
      %v3272 = vadd.f32 %v3111, %v3271
      %v3273 = vpop.f32.mrb[0].mxu0
      %v3274 = vpop.f32.mrb[0].mxu0
      %v3275 = vadd.f32 %v3111, %v3274
      %v3276 = vpop.f32.mrb[0].mxu0
      %3277 = vmatprep.mubr.bf16.mxu0 0
      %3278 = vmatmul.mubr.bf16.gmra.mrb[0].mxu0 %v3149
      %v3279 = vpop.f32.mrb[0].mxu0
      %v3280 = vadd.f32 %v3111, %v3279
      %v3281 = vpop.f32.mrb[0].mxu0
      %v3282 = vpop.f32.mrb[0].mxu0
      %v3283 = vadd.f32 %v3111, %v3282
      %v3284 = vpop.f32.mrb[0].mxu0
      %3285 = vmatprep.mubr.bf16.mxu0 0
      %3286 = vmatmul.mubr.bf16.gmra.mrb[0].mxu0 %v3151
      %v3287 = vpop.f32.mrb[0].mxu0
      %v3288 = vadd.f32 %v3111, %v3287
      %v3289 = vpop.f32.mrb[0].mxu0
      %v3290 = vpop.f32.mrb[0].mxu0
      %v3291 = vadd.f32 %v3111, %v3290
      %v3292 = vpop.f32.mrb[0].mxu0
      %3293 = vmatprep.mubr.bf16.mxu0 0
      %3294 = vmatmul.mubr.bf16.gmra.mrb[0].mxu0 %v3153
      %v3295 = vpop.f32.mrb[0].mxu0
      %v3296 = vadd.f32 %v3111, %v3295
      %v3297 = vpop.f32.mrb[0].mxu0
      %v3298 = vpop.f32.mrb[0].mxu0
      %v3299 = vadd.f32 %v3111, %v3298
      %v3300 = vpop.f32.mrb[0].mxu0
      %3301 = vmatprep.mubr.bf16.mxu0 0
      %3302 = vmatmul.mubr.bf16.gmra.mrb[0].mxu0 %v3155
      %v3303 = vpop.f32.mrb[0].mxu0
      %v3304 = vadd.f32 %v3111, %v3303
      %v3305 = vpop.f32.mrb[0].mxu0
      %v3306 = vpop.f32.mrb[0].mxu0
      %v3307 = vadd.f32 %v3111, %v3306
      %v3308 = vpop.f32.mrb[0].mxu0
      %3309 = vmatprep.mubr.bf16.mxu0 0
      %3310 = vmatmul.mubr.bf16.gmra.mrb[0].mxu0 %v3157
      %v3311 = vpop.f32.mrb[0].mxu0
      %v3312 = vadd.f32 %v3111, %v3311
      %v3313 = vpop.f32.mrb[0].mxu0
      %v3314 = vpop.f32.mrb[0].mxu0
      %v3315 = vadd.f32 %v3111, %v3314
      %v3316 = vpop.f32.mrb[0].mxu0
      %3317 = vmatprep.mubr.bf16.mxu0 0
      %3318 = vmatmul.mubr.bf16.gmra.mrb[0].mxu0 %v3159
      %v3319 = vpop.f32.mrb[0].mxu0
      %v3320 = vadd.f32 %v3111, %v3319
      %v3321 = vpop.f32.mrb[0].mxu0
      %v3322 = vpop.f32.mrb[0].mxu0
      %v3323 = vadd.f32 %v3111, %v3322
      %v3324 = vpop.f32.mrb[0].mxu0
      %3325 = vdwg.mxu0
      %v3326 = vadd.f32 %v3200, 3.0
      %v3327 = vadd.f32 %v3203, 3.0
      %v3328 = vadd.f32 %v3208, 3.0
      %v3329 = vadd.f32 %v3211, 3.0
      %v3330 = vadd.f32 %v3216, 3.0
      %v3331 = vadd.f32 %v3219, 3.0
      %v3332 = vadd.f32 %v3224, 3.0
      %v3333 = vadd.f32 %v3227, 3.0
      %v3334 = vadd.f32 %v3232, 3.0
      %v3335 = vadd.f32 %v3235, 3.0
      %v3336 = vadd.f32 %v3240, 3.0
      %v3337 = vadd.f32 %v3243, 3.0
      %v3338 = vadd.f32 %v3248, 3.0
      %v3339 = vadd.f32 %v3251, 3.0
      %v3340 = vadd.f32 %v3256, 3.0
      %v3341 = vadd.f32 %v3259, 3.0
      %v3342 = vadd.f32 %v3264, 3.0
      %v3343 = vadd.f32 %v3267, 3.0
      %v3344 = vadd.f32 %v3272, 3.0
      %v3345 = vadd.f32 %v3275, 3.0
      %v3346 = vadd.f32 %v3280, 3.0
      %v3347 = vadd.f32 %v3283, 3.0
      %v3348 = vadd.f32 %v3288, 3.0
      %v3349 = vadd.f32 %v3291, 3.0
      %v3350 = vadd.f32 %v3296, 3.0
      %v3351 = vadd.f32 %v3299, 3.0
      %v3352 = vadd.f32 %v3304, 3.0
      %v3353 = vadd.f32 %v3307, 3.0
      %v3354 = vadd.f32 %v3312, 3.0
      %v3355 = vadd.f32 %v3315, 3.0
      %v3356 = vadd.f32 %v3320, 3.0
      %v3357 = vadd.f32 %v3323, 3.0
      %v3358 = vmax.f32 %v3326, 0.0
      %v3359 = vmax.f32 %v3327, 0.0
      %v3360 = vmax.f32 %v3328, 0.0
      %v3361 = vmax.f32 %v3329, 0.0
      %v3362 = vmax.f32 %v3330, 0.0
      %v3363 = vmax.f32 %v3331, 0.0
      %v3364 = vmax.f32 %v3332, 0.0
      %v3365 = vmax.f32 %v3333, 0.0
      %v3366 = vmax.f32 %v3334, 0.0
      %v3367 = vmax.f32 %v3335, 0.0
      %v3368 = vmax.f32 %v3336, 0.0
      %v3369 = vmax.f32 %v3337, 0.0
      %v3370 = vmax.f32 %v3338, 0.0
      %v3371 = vmax.f32 %v3339, 0.0
      %v3372 = vmax.f32 %v3340, 0.0
      %v3373 = vmax.f32 %v3341, 0.0
      %v3374 = vmax.f32 %v3342, 0.0
      %v3375 = vmax.f32 %v3343, 0.0
      %v3376 = vmax.f32 %v3344, 0.0
      %v3377 = vmax.f32 %v3345, 0.0
      %v3378 = vmax.f32 %v3346, 0.0
      %v3379 = vmax.f32 %v3347, 0.0
      %v3380 = vmax.f32 %v3348, 0.0
      %v3381 = vmax.f32 %v3349, 0.0
      %v3382 = vmax.f32 %v3350, 0.0
      %v3383 = vmax.f32 %v3351, 0.0
      %v3384 = vmax.f32 %v3352, 0.0
      %v3385 = vmax.f32 %v3353, 0.0
      %v3386 = vmax.f32 %v3354, 0.0
      %v3387 = vmax.f32 %v3355, 0.0
      %v3388 = vmax.f32 %v3356, 0.0
      %v3389 = vmax.f32 %v3357, 0.0
      %v3390 = vmin.f32 %v3358, 6.0
      %v3391 = vmin.f32 %v3359, 6.0
      %v3392 = vmin.f32 %v3360, 6.0
      %v3393 = vmin.f32 %v3361, 6.0
      %v3394 = vmin.f32 %v3362, 6.0
      %v3395 = vmin.f32 %v3363, 6.0
      %v3396 = vmin.f32 %v3364, 6.0
      %v3397 = vmin.f32 %v3365, 6.0
      %v3398 = vmin.f32 %v3366, 6.0
      %v3399 = vmin.f32 %v3367, 6.0
      %v3400 = vmin.f32 %v3368, 6.0
      %v3401 = vmin.f32 %v3369, 6.0
      %v3402 = vmin.f32 %v3370, 6.0
      %v3403 = vmin.f32 %v3371, 6.0
      %v3404 = vmin.f32 %v3372, 6.0
      %v3405 = vmin.f32 %v3373, 6.0
      %v3406 = vmin.f32 %v3374, 6.0
      %v3407 = vmin.f32 %v3375, 6.0
      %v3408 = vmin.f32 %v3376, 6.0
      %v3409 = vmin.f32 %v3377, 6.0
      %v3410 = vmin.f32 %v3378, 6.0
      %v3411 = vmin.f32 %v3379, 6.0
      %v3412 = vmin.f32 %v3380, 6.0
      %v3413 = vmin.f32 %v3381, 6.0
      %v3414 = vmin.f32 %v3382, 6.0
      %v3415 = vmin.f32 %v3383, 6.0
      %v3416 = vmin.f32 %v3384, 6.0
      %v3417 = vmin.f32 %v3385, 6.0
      %v3418 = vmin.f32 %v3386, 6.0
      %v3419 = vmin.f32 %v3387, 6.0
      %v3420 = vmin.f32 %v3388, 6.0
      %v3421 = vmin.f32 %v3389, 6.0
      %v3422 = vmul.f32 %v3200, %v3390
      %v3423 = vmul.f32 %v3203, %v3391
      %v3424 = vmul.f32 %v3208, %v3392
      %v3425 = vmul.f32 %v3211, %v3393
      %v3426 = vmul.f32 %v3216, %v3394
      %v3427 = vmul.f32 %v3219, %v3395
      %v3428 = vmul.f32 %v3224, %v3396
      %v3429 = vmul.f32 %v3227, %v3397
      %v3430 = vmul.f32 %v3232, %v3398
      %v3431 = vmul.f32 %v3235, %v3399
      %v3432 = vmul.f32 %v3240, %v3400
      %v3433 = vmul.f32 %v3243, %v3401
      %v3434 = vmul.f32 %v3248, %v3402
      %v3435 = vmul.f32 %v3251, %v3403
      %v3436 = vmul.f32 %v3256, %v3404
      %v3437 = vmul.f32 %v3259, %v3405
      %v3438 = vmul.f32 %v3264, %v3406
      %v3439 = vmul.f32 %v3267, %v3407
      %v3440 = vmul.f32 %v3272, %v3408
      %v3441 = vmul.f32 %v3275, %v3409
      %v3442 = vmul.f32 %v3280, %v3410
      %v3443 = vmul.f32 %v3283, %v3411
      %v3444 = vmul.f32 %v3288, %v3412
      %v3445 = vmul.f32 %v3291, %v3413
      %v3446 = vmul.f32 %v3296, %v3414
      %v3447 = vmul.f32 %v3299, %v3415
      %v3448 = vmul.f32 %v3304, %v3416
      %v3449 = vmul.f32 %v3307, %v3417
      %v3450 = vmul.f32 %v3312, %v3418
      %v3451 = vmul.f32 %v3315, %v3419
      %v3452 = vmul.f32 %v3320, %v3420
      %v3453 = vmul.f32 %v3323, %v3421
      %v3454 = vmul.f32 %v3422, 0.16666667
      %v3455 = vmul.f32 %v3423, 0.16666667
      %v3456 = vmul.f32 %v3424, 0.16666667
      %v3457 = vmul.f32 %v3425, 0.16666667
      %v3458 = vmul.f32 %v3426, 0.16666667
      %v3459 = vmul.f32 %v3427, 0.16666667
      %v3460 = vmul.f32 %v3428, 0.16666667
      %v3461 = vmul.f32 %v3429, 0.16666667
      %v3462 = vmul.f32 %v3430, 0.16666667
      %v3463 = vmul.f32 %v3431, 0.16666667
      %v3464 = vmul.f32 %v3432, 0.16666667
      %v3465 = vmul.f32 %v3433, 0.16666667
      %v3466 = vmul.f32 %v3434, 0.16666667
      %v3467 = vmul.f32 %v3435, 0.16666667
      %v3468 = vmul.f32 %v3436, 0.16666667
      %v3469 = vmul.f32 %v3437, 0.16666667
      %v3470 = vmul.f32 %v3438, 0.16666667
      %v3471 = vmul.f32 %v3439, 0.16666667
      %v3472 = vmul.f32 %v3440, 0.16666667
      %v3473 = vmul.f32 %v3441, 0.16666667
      %v3474 = vmul.f32 %v3442, 0.16666667
      %v3475 = vmul.f32 %v3443, 0.16666667
      %v3476 = vmul.f32 %v3444, 0.16666667
      %v3477 = vmul.f32 %v3445, 0.16666667
      %v3478 = vmul.f32 %v3446, 0.16666667
      %v3479 = vmul.f32 %v3447, 0.16666667
      %v3480 = vmul.f32 %v3448, 0.16666667
      %v3481 = vmul.f32 %v3449, 0.16666667
      %v3482 = vmul.f32 %v3450, 0.16666667
      %v3483 = vmul.f32 %v3451, 0.16666667
      %v3484 = vmul.f32 %v3452, 0.16666667
      %v3485 = vmul.f32 %v3453, 0.16666667
      %v3486 = vpack.c.bf16 %v3455, %v3454
      %v3487 = vpack.c.bf16 %v3457, %v3456
      %v3488 = vpack.c.bf16 %v3459, %v3458
      %v3489 = vpack.c.bf16 %v3461, %v3460
      %v3490 = vpack.c.bf16 %v3463, %v3462
      %v3491 = vpack.c.bf16 %v3465, %v3464
      %v3492 = vpack.c.bf16 %v3467, %v3466
      %v3493 = vpack.c.bf16 %v3469, %v3468
      %v3494 = vpack.c.bf16 %v3471, %v3470
      %v3495 = vpack.c.bf16 %v3473, %v3472
      %v3496 = vpack.c.bf16 %v3475, %v3474
      %v3497 = vpack.c.bf16 %v3477, %v3476
      %v3498 = vpack.c.bf16 %v3479, %v3478
      %v3499 = vpack.c.bf16 %v3481, %v3480
      %v3500 = vpack.c.bf16 %v3483, %v3482
      %v3501 = vpack.c.bf16 %v3485, %v3484
      %v3518 = vunpack.c.l.b16 %v3486
      %v3519 = vunpack.c.h.b16 %v3486
      %v3520 = vunpack.c.l.b16 %v3487
      %v3521 = vunpack.c.h.b16 %v3487
      %v3522 = vunpack.c.l.b16 %v3488
      %v3523 = vunpack.c.h.b16 %v3488
      %v3524 = vunpack.c.l.b16 %v3489
      %v3525 = vunpack.c.h.b16 %v3489
      %v3526 = vunpack.c.l.b16 %v3490
      %v3527 = vunpack.c.h.b16 %v3490
      %v3528 = vunpack.c.l.b16 %v3491
      %v3529 = vunpack.c.h.b16 %v3491
      %v3530 = vunpack.c.l.b16 %v3492
      %v3531 = vunpack.c.h.b16 %v3492
      %v3532 = vunpack.c.l.b16 %v3493
      %v3533 = vunpack.c.h.b16 %v3493
      %v3534 = vunpack.c.l.b16 %v3494
      %v3535 = vunpack.c.h.b16 %v3494
      %v3536 = vunpack.c.l.b16 %v3495
      %v3537 = vunpack.c.h.b16 %v3495
      %v3538 = vunpack.c.l.b16 %v3496
      %v3539 = vunpack.c.h.b16 %v3496
      %v3540 = vunpack.c.l.b16 %v3497
      %v3541 = vunpack.c.h.b16 %v3497
      %v3542 = vunpack.c.l.b16 %v3498
      %v3543 = vunpack.c.h.b16 %v3498
      %v3544 = vunpack.c.l.b16 %v3499
      %v3545 = vunpack.c.h.b16 %v3499
      %v3546 = vunpack.c.l.b16 %v3500
      %v3547 = vunpack.c.h.b16 %v3500
      %v3548 = vunpack.c.l.b16 %v3501
      %v3549 = vunpack.c.h.b16 %v3501
      %v3550 = vpack.c.b16 %v3518, %v3518
      %v3551 = vpack.c.b16 %v3519, %v3519
      %v3552 = vpack.c.b16 %v3520, %v3520
      %v3553 = vpack.c.b16 %v3521, %v3521
      %v3554 = vpack.c.b16 %v3522, %v3522
      %v3555 = vpack.c.b16 %v3523, %v3523
      %v3556 = vpack.c.b16 %v3524, %v3524
      %v3557 = vpack.c.b16 %v3525, %v3525
      %v3558 = vpack.c.b16 %v3526, %v3526
      %v3559 = vpack.c.b16 %v3527, %v3527
      %v3560 = vpack.c.b16 %v3528, %v3528
      %v3561 = vpack.c.b16 %v3529, %v3529
      %v3562 = vpack.c.b16 %v3530, %v3530
      %v3563 = vpack.c.b16 %v3531, %v3531
      %v3564 = vpack.c.b16 %v3532, %v3532
      %v3565 = vpack.c.b16 %v3533, %v3533
      %v3566 = vpack.c.b16 %v3534, %v3534
      %v3567 = vpack.c.b16 %v3535, %v3535
      %v3568 = vpack.c.b16 %v3536, %v3536
      %v3569 = vpack.c.b16 %v3537, %v3537
      %v3570 = vpack.c.b16 %v3538, %v3538
      %v3571 = vpack.c.b16 %v3539, %v3539
      %v3572 = vpack.c.b16 %v3540, %v3540
      %v3573 = vpack.c.b16 %v3541, %v3541
      %v3574 = vpack.c.b16 %v3542, %v3542
      %v3575 = vpack.c.b16 %v3543, %v3543
      %v3576 = vpack.c.b16 %v3544, %v3544
      %v3577 = vpack.c.b16 %v3545, %v3545
      %v3578 = vpack.c.b16 %v3546, %v3546
      %v3579 = vpack.c.b16 %v3547, %v3547
      %v3580 = vpack.c.b16 %v3548, %v3548
      %v3581 = vpack.c.b16 %v3549, %v3549
      %3614 = vst [vmem:[%s240] sm:$0xf] %v3550
      %3615 = vst [vmem:[%s240 + $0x4] sm:$0xf] %v3551
      %3616 = vst [vmem:[%s240 + $0x8] sm:$0xf] %v3552
      %3617 = vst [vmem:[%s240 + $0xc] sm:$0xf] %v3553
      %3618 = vst [vmem:[%s240 + $0x10] sm:$0xf] %v3554
      %3619 = vst [vmem:[%s240 + $0x14] sm:$0xf] %v3555
      %3620 = vst [vmem:[%s240 + $0x18] sm:$0xf] %v3556
      %3621 = vst [vmem:[%s240 + $0x1c] sm:$0xf] %v3557
      %3622 = vst [vmem:[%s240 + $0x20] sm:$0xf] %v3558
      %3623 = vst [vmem:[%s240 + $0x24] sm:$0xf] %v3559
      %3624 = vst [vmem:[%s240 + $0x28] sm:$0xf] %v3560
      %3625 = vst [vmem:[%s240 + $0x2c] sm:$0xf] %v3561
      %3626 = vst [vmem:[%s240 + $0x30] sm:$0xf] %v3562
      %3627 = vst [vmem:[%s240 + $0x34] sm:$0xf] %v3563
      %3628 = vst [vmem:[%s240 + $0x38] sm:$0xf] %v3564
      %3629 = vst [vmem:[%s240 + $0x3c] sm:$0xf] %v3565
      %3630 = vst [vmem:[%s240 + $0x40] sm:$0xf] %v3566
      %3631 = vst [vmem:[%s240 + $0x44] sm:$0xf] %v3567
      %3632 = vst [vmem:[%s240 + $0x48] sm:$0xf] %v3568
      %3633 = vst [vmem:[%s240 + $0x4c] sm:$0xf] %v3569
      %3634 = vst [vmem:[%s240 + $0x50] sm:$0xf] %v3570
      %3635 = vst [vmem:[%s240 + $0x54] sm:$0xf] %v3571
      %3636 = vst [vmem:[%s240 + $0x58] sm:$0xf] %v3572
      %3637 = vst [vmem:[%s240 + $0x5c] sm:$0xf] %v3573
      %3638 = vst [vmem:[%s240 + $0x60] sm:$0xf] %v3574
      %3639 = vst [vmem:[%s240 + $0x64] sm:$0xf] %v3575
      %3640 = vst [vmem:[%s240 + $0x68] sm:$0xf] %v3576
      %3641 = vst [vmem:[%s240 + $0x6c] sm:$0xf] %v3577
      %3642 = vst [vmem:[%s240 + $0x70] sm:$0xf] %v3578
      %3643 = vst [vmem:[%s240 + $0x74] sm:$0xf] %v3579
      %3644 = vst [vmem:[%s240 + $0x78] sm:$0xf] %v3580
      %3645 = vst [vmem:[%s240 + $0x7c] sm:$0xf] %v3581
      %s3646 = smul.u32 16, %s21
      %p3647 = scmp.lt.s32.totalorder %s19, 1
      %s3648 = scalar_select %p3647, %s19, 1
      %p3649 = scmp.lt.s32.totalorder %s3646, 15
      %s3650 = scalar_select %p3649, %s3646, 15
      %p3651 = scmp.lt.s32.totalorder %s20, 0
      %s3652 = scalar_select %p3651, %s20, 0
      %s3653 = smul.addr %s3650, 2
      %s3654 = sadd.s32 %s3652, %s3653
      %s3655 = smul.addr %s3648, 32
      %s3656 = sadd.s32 %s3654, %s3655
      %s3657 = smul.addr %s3656, 4
      %s3658 = scalar_lea.vmem %s3, %s3657
      // Predicated region
      $region33: #{conv_bn_hardswish.1} parent=31 // pred_check
        %p3659 = pneg %p133
      $region34: #{conv_bn_hardswish.1} parent=31 // pred_check_branch
        %3661 = sbr.rel (%p3659) target = $region36
      $region35: #{conv_bn_hardswish.1} parent=31 // pred_region
        %s3662 = smul.u32 16, %s21
      $region36: #{conv_bn_hardswish.1} parent=31 // pred_fallthru
        _
    $region32: #{conv_bn_hardswish.1} parent=5 // pred_fallthru
      _
    %p3663 = scmp.le.s32.totalorder 2, %s9
    // Predicated region
    $region37: #{conv_bn_hardswish.1} parent=5 // pred_check
      %p3664 = pneg %p3663
    $region38: #{conv_bn_hardswish.1} parent=5 // pred_check_branch
      %3666 = sbr.rel (%p3664) target = $region40
    $region39: #{conv_bn_hardswish.1} parent=5 // pred_region
      %s3667 = ssub.s32 %s9, 2
      // Predicated region
      $region41: #{conv_bn_hardswish.1} parent=39 // pred_check
        %p3668 = pneg %p139
      $region42: #{conv_bn_hardswish.1} parent=39 // pred_check_branch
        %3670 = sbr.rel (%p3668) target = $region44
      $region43: #{conv_bn_hardswish.1} parent=39 // pred_region
        %s3671 = smul.u32 16, %s24
        %p3672 = scmp.lt.s32.totalorder %s22, 1
        %s3673 = scalar_select %p3672, %s22, 1
        %p3674 = scmp.lt.s32.totalorder %s3671, 15
        %s3675 = scalar_select %p3674, %s3671, 15
        %p3676 = scmp.lt.s32.totalorder %s23, 0
        %s3677 = scalar_select %p3676, %s23, 0
        %s3678 = smul.addr %s3675, 2
        %s3679 = sadd.s32 %s3677, %s3678
        %s3680 = smul.addr %s3673, 32
        %s3681 = sadd.s32 %s3679, %s3680
        %s3682 = smul.addr %s3681, 4
        %s3683 = scalar_lea.vmem %s3, %s3682
      $region44: #{conv_bn_hardswish.1} parent=39 // pred_fallthru
        _
    $region40: #{conv_bn_hardswish.1} parent=5 // pred_fallthru
      _
  $region6: #{conv_bn_hardswish.1} parent=0 // loop_footer
    %s13 = sadd.s32 1, %s9
  $region7: #{conv_bn_hardswish.1} parent=0 // loop_footer_branch
    %8 = sbr.rel target = $region3
  $region8: #{conv_bn_hardswish.1} parent=0 // loop_exit
    _

</llo_original>
